<compile_context>
chip_gen: v7x
topology: tpu7x:2x2x1
jax: 0.10.0
libtpu: 0.0.40
codegen_flags: <defaults>
</compile_context>

<pallas_src>
import numpy as np
import jax
import jax.numpy as jnp
from jax.experimental import pallas as pl
from jax.experimental.pallas import tpu as pltpu


def _round_up(x, m):
    return ((x + m - 1) // m) * m


def lstm_recurrence_pallas(gates_x, mask, h0, c0, whh_t, *, t_chunk, b_tile):
    """Masked LSTM recurrence.

    gates_x: [T_run, B_pad, 4*HP] f32  (precomputed x @ W_ih^T + bias, per-gate
             columns padded to HP lanes)
    mask:    [T_run, B_pad, 1]   f32  (1.0 where t < seq_len[b], else 0.0)
    h0, c0:  [B_pad, HP]         f32
    whh_t:   [HP, 4*HP]          f32  (W_hh^T, per-gate columns padded to HP)
    Returns (out [T_run, B_pad, HP], h_n [B_pad, HP], c_n [B_pad, HP]).
    """
    T_run, B_pad, G = gates_x.shape
    HP = h0.shape[1]
    assert G == 4 * HP
    assert T_run % t_chunk == 0 and B_pad % b_tile == 0
    nt = T_run // t_chunk
    nb = B_pad // b_tile

    def kernel(xg_ref, mask_ref, h0_ref, c0_ref, whh_ref,
               out_ref, hn_ref, cn_ref):
        ti = pl.program_id(1)

        # hn/cn output blocks have a constant index over the time axis, so they
        # stay resident in VMEM across all time chunks -> use them as the state.
        @pl.when(ti == 0)
        def _():
            hn_ref[...] = h0_ref[...]
            cn_ref[...] = c0_ref[...]

        h = hn_ref[...]
        c = cn_ref[...]
        w = whh_ref[...]

        # statically unrolled inner time loop (short, fixed trip count)
        for tt in range(t_chunk):
            gates = xg_ref[tt] + jnp.dot(h, w,
                                         preferred_element_type=jnp.float32)
            i_g = jax.nn.sigmoid(gates[:, 0 * HP:1 * HP])
            f_g = jax.nn.sigmoid(gates[:, 1 * HP:2 * HP])
            g_g = jnp.tanh(gates[:, 2 * HP:3 * HP])
            o_g = jax.nn.sigmoid(gates[:, 3 * HP:4 * HP])

            c_new = f_g * c + i_g * g_g
            h_new = o_g * jnp.tanh(c_new)

            m = mask_ref[tt]                    # (b_tile, 1)
            # packed-sequence semantics: freeze state past seq_len, zero output
            h = h + m * (h_new - h)
            c = c + m * (c_new - c)
            out_ref[tt] = (m * h_new).astype(out_ref.dtype)

        hn_ref[...] = h
        cn_ref[...] = c

    grid_spec = pltpu.PrefetchScalarGridSpec(
        num_scalar_prefetch=0,
        grid=(nb, nt),                               # batch tiles outer, time inner
        in_specs=[
            pl.BlockSpec((t_chunk, b_tile, G), lambda bi, ti: (ti, bi, 0)),   # gates_x
            pl.BlockSpec((t_chunk, b_tile, 1), lambda bi, ti: (ti, bi, 0)),   # mask
            pl.BlockSpec((b_tile, HP), lambda bi, ti: (bi, 0)),               # h0
            pl.BlockSpec((b_tile, HP), lambda bi, ti: (bi, 0)),               # c0
            pl.BlockSpec((HP, G), lambda bi, ti: (0, 0)),                     # W_hh^T
        ],
        out_specs=[
            pl.BlockSpec((t_chunk, b_tile, HP), lambda bi, ti: (ti, bi, 0)),  # out
            pl.BlockSpec((b_tile, HP), lambda bi, ti: (bi, 0)),               # h_n
            pl.BlockSpec((b_tile, HP), lambda bi, ti: (bi, 0)),               # c_n
        ],
    )

    return pl.pallas_call(
        kernel,
        grid_spec=grid_spec,
        out_shape=(
            jax.ShapeDtypeStruct((T_run, B_pad, HP), jnp.float32),
            jax.ShapeDtypeStruct((B_pad, HP), jnp.float32),
            jax.ShapeDtypeStruct((B_pad, HP), jnp.float32),
        ),
        compiler_params=pltpu.CompilerParams(
            dimension_semantics=("parallel", "arbitrary")),
    )(gates_x, mask, h0, c0, whh_t)


class PallasRNN:
    """JAX/Pallas analogue of the PyTorch RNN module (single-layer LSTM)."""

    def __init__(self, input_size, hidden_size, key, *, t_chunk=8, b_tile=8):
        self.input_size = input_size
        self.hidden_size = hidden_size
        self.num_layers = 1
        self.t_chunk = t_chunk
        self.b_tile = b_tile                       # multiple of 8 (sublane)
        self.hp = _round_up(hidden_size, 128)      # lane-aligned per-gate width

        k = 1.0 / np.sqrt(hidden_size)
        k1, k2, k3, k4 = jax.random.split(key, 4)
        # PyTorch LSTM parameter shapes: W_ih [4H, D], W_hh [4H, H], b_* [4H]
        self.w_ih = jax.random.uniform(k1, (4 * hidden_size, input_size),
                                       jnp.float32, -k, k)
        self.w_hh = jax.random.uniform(k2, (4 * hidden_size, hidden_size),
                                       jnp.float32, -k, k)
        self.b_ih = jax.random.uniform(k3, (4 * hidden_size,), jnp.float32, -k, k)
        self.b_hh = jax.random.uniform(k4, (4 * hidden_size,), jnp.float32, -k, k)

        # Pre-pad / transpose parameters once (per-gate lane padding to HP).
        H, D, HP = hidden_size, input_size, self.hp
        pad_h = HP - H
        # W_ih^T: (D, 4H) -> (D, 4, H) -> pad -> (D, 4*HP)
        wih_t = jnp.transpose(self.w_ih).reshape(D, 4, H)
        self.w_ih_t_pad = jnp.pad(wih_t, ((0, 0), (0, 0), (0, pad_h))
                                  ).reshape(D, 4 * HP)
        # W_hh^T: (H, 4H) -> (H, 4, H) -> pad cols -> pad rows -> (HP, 4*HP)
        whh_t = jnp.transpose(self.w_hh).reshape(H, 4, H)
        whh_t = jnp.pad(whh_t, ((0, pad_h), (0, 0), (0, pad_h)))
        self.w_hh_t_pad = whh_t.reshape(HP, 4 * HP)
        # summed bias, per-gate padded: (4*HP,)
        bias = (self.b_ih + self.b_hh).reshape(4, H)
        self.bias_pad = jnp.pad(bias, ((0, 0), (0, pad_h))).reshape(4 * HP)

        self.hidden_state = None

    def initialize_hidden_state(self, batch_size):
        h = jnp.zeros((self.num_layers, batch_size, self.hidden_size), jnp.float32)
        c = jnp.zeros((self.num_layers, batch_size, self.hidden_size), jnp.float32)
        self.hidden_state = (h, c)

    def forward(self, inp):
        t, seq_len = inp                      # t: [B, T, D], seq_len: [B] (host ints)
        seq_len = np.asarray(seq_len)
        B, T, D = t.shape
        H, HP = self.hidden_size, self.hp

        # _ix = seq_len.nonzero()  (host-side, as in the PyTorch module)
        _ix = np.nonzero(seq_len)[0]
        Bsel = int(_ix.shape[0])
        len_sel = seq_len[_ix].astype(np.int32)
        ix_dev = jnp.asarray(_ix)

        B_pad = _round_up(max(Bsel, 1), self.b_tile)
        T_eff = int(len_sel.max())                        # clamp grid to max length
        T_run = _round_up(T_eff, self.t_chunk)
        Tc = min(T_run, T)

        # selected sequences, time-major, padded: [T_run, B_pad, D]
        x_sel = jnp.asarray(t)[ix_dev].astype(jnp.float32)        # [Bsel, T, D]
        x_tbd = jnp.zeros((T_run, B_pad, D), jnp.float32)
        x_tbd = x_tbd.at[:Tc, :Bsel, :].set(
            jnp.transpose(x_sel[:, :Tc, :], (1, 0, 2)))

        # Hoisted input projection over ALL timesteps (one big MXU matmul, XLA):
        gates_x = (jnp.einsum('tbd,dg->tbg', x_tbd, self.w_ih_t_pad,
                              preferred_element_type=jnp.float32)
                   + self.bias_pad[None, None, :])                 # [T_run,B_pad,4HP]

        # validity mask (packed-sequence semantics)
        valid = (np.arange(T_run)[:, None] < len_sel[None, :]).astype(np.float32)
        mask_np = np.zeros((T_run, B_pad, 1), np.float32)
        mask_np[:, :Bsel, 0] = valid
        mask = jnp.asarray(mask_np)

        # initial state gathered at _ix, padded to (B_pad, HP)
        h0 = jnp.zeros((B_pad, HP), jnp.float32)
        c0 = jnp.zeros((B_pad, HP), jnp.float32)
        h0 = h0.at[:Bsel, :H].set(self.hidden_state[0][0, ix_dev])
        c0 = c0.at[:Bsel, :H].set(self.hidden_state[1][0, ix_dev])

        out_run, hn, cn = lstm_recurrence_pallas(
            gates_x, mask, h0, c0, self.w_hh_t_pad,
            t_chunk=self.t_chunk, b_tile=self.b_tile)

        # _update_hidden_state at _ix (stateful)
        h_new = self.hidden_state[0].at[0, ix_dev].set(hn[:Bsel, :H])
        c_new = self.hidden_state[1].at[0, ix_dev].set(cn[:Bsel, :H])
        self.hidden_state = (h_new, c_new)

        # pad_packed_sequence(batch_first=True, total_length=T) -> [Bsel, T, H]
        out = jnp.zeros((Bsel, T, H), jnp.float32)
        out = out.at[:, :Tc, :].set(
            jnp.transpose(out_run[:Tc, :Bsel, :H], (1, 0, 2)))
        return out


def _reference_lstm(x_sel, len_sel, h0, c0, w_ih, w_hh, b_ih, b_hh):
    """Pure-JAX reference of the masked LSTM (packed-sequence semantics)."""
    Bsel, T, D = x_sel.shape
    H = h0.shape[1]

    def step(carry, xs):
        h, c = carry
        x_t, tt = xs
        gates = x_t @ w_ih.T + h @ w_hh.T + b_ih + b_hh
        i = jax.nn.sigmoid(gates[:, :H])
        f = jax.nn.sigmoid(gates[:, H:2 * H])
        g = jnp.tanh(gates[:, 2 * H:3 * H])
        o = jax.nn.sigmoid(gates[:, 3 * H:])
        c_new = f * c + i * g
        h_new = o * jnp.tanh(c_new)
        valid = (len_sel > tt)[:, None]
        h = jnp.where(valid, h_new, h)
        c = jnp.where(valid, c_new, c)
        y = jnp.where(valid, h_new, 0.0)
        return (h, c), y

    (_, _), ys = jax.lax.scan(step, (h0, c0),
                              (jnp.transpose(x_sel, (1, 0, 2)), jnp.arange(T)))
    return jnp.transpose(ys, (1, 0, 2))


if __name__ == "__main__":
    key = jax.random.PRNGKey(0)
    k_data, k_param = jax.random.split(key)

    B, T, D, H = 3, 8, 16, 32
    t_in = jax.random.normal(k_data, (B, T, D), jnp.float32)
    # pack_padded_sequence default enforce_sorted=True -> lengths descending;
    # include a zero-length sequence to exercise the _ix selection.
    seq_len = np.array([8, 5, 0], dtype=np.int32)

    model = PallasRNN(D, H, k_param)
    model.initialize_hidden_state(B)

    out = model.forward((t_in, seq_len))
    out = jax.block_until_ready(out)

    # sanity check against a pure-JAX reference
    _ix = np.nonzero(seq_len)[0]
    ref = _reference_lstm(t_in[jnp.asarray(_ix)],
                          jnp.asarray(seq_len)[jnp.asarray(_ix)],
                          jnp.zeros((len(_ix), H), jnp.float32),
                          jnp.zeros((len(_ix), H), jnp.float32),
                          model.w_ih, model.w_hh, model.b_ih, model.b_hh)
    np.testing.assert_allclose(np.asarray(out), np.asarray(ref),
                               atol=1e-3, rtol=1e-3)

    print("KERNEL_OK")
</pallas_src>

<mosaic_0001>
module attributes {stable_mosaic.version = 11 : i64} {
  func.func @kernel(%arg0: i32, %arg1: i32, %arg2: memref<8x8x512xf32, #tpu.memory_space<vmem>>, %arg3: memref<8x8x1xf32, #tpu.memory_space<vmem>>, %arg4: memref<8x128xf32, #tpu.memory_space<vmem>>, %arg5: memref<8x128xf32, #tpu.memory_space<vmem>>, %arg6: memref<128x512xf32, #tpu.memory_space<vmem>>, %arg7: memref<8x8x128xf32, #tpu.memory_space<vmem>>, %arg8: memref<8x128xf32, #tpu.memory_space<vmem>>, %arg9: memref<8x128xf32, #tpu.memory_space<vmem>>) attributes {dimension_semantics = [#tpu.dimension_semantics<parallel>, #tpu.dimension_semantics<arbitrary>], iteration_bounds = array<i64: 1, 1>, scalar_prefetch = 0 : i64, scratch_operands = 0 : i64, tpu.core_type = #tpu.core_type<tc>, window_params = [{transform_indices = @transform_0, window_bounds = array<i64: 8, 8, 512>}, {transform_indices = @transform_1, window_bounds = array<i64: 8, 8, 1>}, {transform_indices = @transform_2, window_bounds = array<i64: 8, 128>}, {transform_indices = @transform_3, window_bounds = array<i64: 8, 128>}, {pipeline_mode = #tpu.pipeline_mode<synchronous>, transform_indices = @transform_4, window_bounds = array<i64: 128, 512>}, {transform_indices = @transform_5, window_bounds = array<i64: 8, 8, 128>}, {transform_indices = @transform_6, window_bounds = array<i64: 8, 128>}, {transform_indices = @transform_7, window_bounds = array<i64: 8, 128>}]} {
    %c0_i32 = arith.constant 0 : i32
    %0 = arith.cmpi eq, %arg1, %c0_i32 : i32
    %1 = arith.extui %0 : i1 to i32
    %c0_i32_0 = arith.constant 0 : i32
    %2 = arith.cmpi ne, %1, %c0_i32_0 : i32
    scf.if %2 {
      %c0_106 = arith.constant 0 : index
      %c0_107 = arith.constant 0 : index
      %360 = vector.load %arg4[%c0_106, %c0_107] : memref<8x128xf32, #tpu.memory_space<vmem>>, vector<8x128xf32>
      %c0_108 = arith.constant 0 : index
      %c0_109 = arith.constant 0 : index
      %361 = vector.load %arg8[%c0_108, %c0_109] : memref<8x128xf32, #tpu.memory_space<vmem>>, vector<8x128xf32>
      tpu.vector_store %arg8[%c0_108, %c0_109], %360 {strides = array<i32>} : memref<8x128xf32, #tpu.memory_space<vmem>>, vector<8x128xf32>,
      %c0_110 = arith.constant 0 : index
      %c0_111 = arith.constant 0 : index
      %362 = vector.load %arg5[%c0_110, %c0_111] : memref<8x128xf32, #tpu.memory_space<vmem>>, vector<8x128xf32>
      %c0_112 = arith.constant 0 : index
      %c0_113 = arith.constant 0 : index
      %363 = vector.load %arg9[%c0_112, %c0_113] : memref<8x128xf32, #tpu.memory_space<vmem>>, vector<8x128xf32>
      tpu.vector_store %arg9[%c0_112, %c0_113], %362 {strides = array<i32>} : memref<8x128xf32, #tpu.memory_space<vmem>>, vector<8x128xf32>,
    } else {
    }
    %c0 = arith.constant 0 : index
    %c0_1 = arith.constant 0 : index
    %3 = vector.load %arg8[%c0, %c0_1] : memref<8x128xf32, #tpu.memory_space<vmem>>, vector<8x128xf32>
    %c0_2 = arith.constant 0 : index
    %c0_3 = arith.constant 0 : index
    %4 = vector.load %arg9[%c0_2, %c0_3] : memref<8x128xf32, #tpu.memory_space<vmem>>, vector<8x128xf32>
    %c0_4 = arith.constant 0 : index
    %c0_5 = arith.constant 0 : index
    %5 = vector.load %arg6[%c0_4, %c0_5] : memref<128x512xf32, #tpu.memory_space<vmem>>, vector<128x512xf32>
    %c0_6 = arith.constant 0 : index
    %c0_7 = arith.constant 0 : index
    %c0_8 = arith.constant 0 : index
    %6 = vector.load %arg2[%c0_6, %c0_7, %c0_8] : memref<8x8x512xf32, #tpu.memory_space<vmem>>, vector<1x8x512xf32>
    %7 = vector.shape_cast %6 : vector<1x8x512xf32> to vector<8x512xf32>
    %cst = arith.constant dense<0.000000e+00> : vector<8x512xf32>
    %8 = tpu.matmul %3, %5, %cst {dimension_numbers = #tpu.dot_dimension_numbers<[1], [0], [0], [1], [0, 0, 1, 1], [], []>} : vector<8x128xf32>, vector<128x512xf32>, vector<8x512xf32> -> vector<8x512xf32>
    %9 = arith.addf %7, %8 : vector<8x512xf32>
    %10 = vector.extract_strided_slice %9 {offsets = [0, 0], sizes = [8, 128], strides = [1, 1]} : vector<8x512xf32> to vector<8x128xf32>
    %11 = arith.negf %10 : vector<8x128xf32>
    %12 = math.exp %11 : vector<8x128xf32>
    %cst_9 = arith.constant 1.000000e+00 : f32
    %13 = vector.broadcast %cst_9 : f32 to vector<8x128xf32>
    %14 = arith.addf %13, %12 : vector<8x128xf32>
    %15 = arith.divf %13, %14 : vector<8x128xf32>
    %16 = vector.extract_strided_slice %9 {offsets = [0, 128], sizes = [8, 128], strides = [1, 1]} : vector<8x512xf32> to vector<8x128xf32>
    %17 = arith.negf %16 : vector<8x128xf32>
    %18 = math.exp %17 : vector<8x128xf32>
    %cst_10 = arith.constant 1.000000e+00 : f32
    %19 = vector.broadcast %cst_10 : f32 to vector<8x128xf32>
    %20 = arith.addf %19, %18 : vector<8x128xf32>
    %21 = arith.divf %19, %20 : vector<8x128xf32>
    %22 = vector.extract_strided_slice %9 {offsets = [0, 256], sizes = [8, 128], strides = [1, 1]} : vector<8x512xf32> to vector<8x128xf32>
    %23 = math.tanh %22 : vector<8x128xf32>
    %24 = vector.extract_strided_slice %9 {offsets = [0, 384], sizes = [8, 128], strides = [1, 1]} : vector<8x512xf32> to vector<8x128xf32>
    %25 = arith.negf %24 : vector<8x128xf32>
    %26 = math.exp %25 : vector<8x128xf32>
    %cst_11 = arith.constant 1.000000e+00 : f32
    %27 = vector.broadcast %cst_11 : f32 to vector<8x128xf32>
    %28 = arith.addf %27, %26 : vector<8x128xf32>
    %29 = arith.divf %27, %28 : vector<8x128xf32>
    %30 = arith.mulf %21, %4 : vector<8x128xf32>
    %31 = arith.mulf %15, %23 : vector<8x128xf32>
    %32 = arith.addf %30, %31 : vector<8x128xf32>
    %33 = math.tanh %32 : vector<8x128xf32>
    %34 = arith.mulf %29, %33 : vector<8x128xf32>
    %c0_12 = arith.constant 0 : index
    %c0_13 = arith.constant 0 : index
    %c0_14 = arith.constant 0 : index
    %35 = vector.load %arg3[%c0_12, %c0_13, %c0_14] : memref<8x8x1xf32, #tpu.memory_space<vmem>>, vector<1x8x1xf32>
    %36 = vector.shape_cast %35 : vector<1x8x1xf32> to vector<8x1xf32>
    %37 = arith.subf %34, %3 : vector<8x128xf32>
    %38 = vector.broadcast %36 : vector<8x1xf32> to vector<8x128xf32>
    %39 = arith.mulf %38, %37 : vector<8x128xf32>
    %40 = arith.addf %3, %39 : vector<8x128xf32>
    %41 = arith.subf %32, %4 : vector<8x128xf32>
    %42 = vector.broadcast %36 : vector<8x1xf32> to vector<8x128xf32>
    %43 = arith.mulf %42, %41 : vector<8x128xf32>
    %44 = arith.addf %4, %43 : vector<8x128xf32>
    %45 = vector.broadcast %36 : vector<8x1xf32> to vector<8x128xf32>
    %46 = arith.mulf %45, %34 : vector<8x128xf32>
    %c0_15 = arith.constant 0 : index
    %c0_16 = arith.constant 0 : index
    %c0_17 = arith.constant 0 : index
    %47 = vector.load %arg7[%c0_15, %c0_16, %c0_17] : memref<8x8x128xf32, #tpu.memory_space<vmem>>, vector<1x8x128xf32>
    %48 = vector.shape_cast %47 : vector<1x8x128xf32> to vector<8x128xf32>
    %49 = vector.shape_cast %46 : vector<8x128xf32> to vector<1x8x128xf32>
    tpu.vector_store %arg7[%c0_15, %c0_16, %c0_17], %49 {strides = array<i32>} : memref<8x8x128xf32, #tpu.memory_space<vmem>>, vector<1x8x128xf32>,
    %c1 = arith.constant 1 : index
    %c0_18 = arith.constant 0 : index
    %c0_19 = arith.constant 0 : index
    %50 = vector.load %arg2[%c1, %c0_18, %c0_19] : memref<8x8x512xf32, #tpu.memory_space<vmem>>, vector<1x8x512xf32>
    %51 = vector.shape_cast %50 : vector<1x8x512xf32> to vector<8x512xf32>
    %cst_20 = arith.constant dense<0.000000e+00> : vector<8x512xf32>
    %52 = tpu.matmul %40, %5, %cst_20 {dimension_numbers = #tpu.dot_dimension_numbers<[1], [0], [0], [1], [0, 0, 1, 1], [], []>} : vector<8x128xf32>, vector<128x512xf32>, vector<8x512xf32> -> vector<8x512xf32>
    %53 = arith.addf %51, %52 : vector<8x512xf32>
    %54 = vector.extract_strided_slice %53 {offsets = [0, 0], sizes = [8, 128], strides = [1, 1]} : vector<8x512xf32> to vector<8x128xf32>
    %55 = arith.negf %54 : vector<8x128xf32>
    %56 = math.exp %55 : vector<8x128xf32>
    %cst_21 = arith.constant 1.000000e+00 : f32
    %57 = vector.broadcast %cst_21 : f32 to vector<8x128xf32>
    %58 = arith.addf %57, %56 : vector<8x128xf32>
    %59 = arith.divf %57, %58 : vector<8x128xf32>
    %60 = vector.extract_strided_slice %53 {offsets = [0, 128], sizes = [8, 128], strides = [1, 1]} : vector<8x512xf32> to vector<8x128xf32>
    %61 = arith.negf %60 : vector<8x128xf32>
    %62 = math.exp %61 : vector<8x128xf32>
    %cst_22 = arith.constant 1.000000e+00 : f32
    %63 = vector.broadcast %cst_22 : f32 to vector<8x128xf32>
    %64 = arith.addf %63, %62 : vector<8x128xf32>
    %65 = arith.divf %63, %64 : vector<8x128xf32>
    %66 = vector.extract_strided_slice %53 {offsets = [0, 256], sizes = [8, 128], strides = [1, 1]} : vector<8x512xf32> to vector<8x128xf32>
    %67 = math.tanh %66 : vector<8x128xf32>
    %68 = vector.extract_strided_slice %53 {offsets = [0, 384], sizes = [8, 128], strides = [1, 1]} : vector<8x512xf32> to vector<8x128xf32>
    %69 = arith.negf %68 : vector<8x128xf32>
    %70 = math.exp %69 : vector<8x128xf32>
    %cst_23 = arith.constant 1.000000e+00 : f32
    %71 = vector.broadcast %cst_23 : f32 to vector<8x128xf32>
    %72 = arith.addf %71, %70 : vector<8x128xf32>
    %73 = arith.divf %71, %72 : vector<8x128xf32>
    %74 = arith.mulf %65, %44 : vector<8x128xf32>
    %75 = arith.mulf %59, %67 : vector<8x128xf32>
    %76 = arith.addf %74, %75 : vector<8x128xf32>
    %77 = math.tanh %76 : vector<8x128xf32>
    %78 = arith.mulf %73, %77 : vector<8x128xf32>
    %c1_24 = arith.constant 1 : index
    %c0_25 = arith.constant 0 : index
    %c0_26 = arith.constant 0 : index
    %79 = vector.load %arg3[%c1_24, %c0_25, %c0_26] : memref<8x8x1xf32, #tpu.memory_space<vmem>>, vector<1x8x1xf32>
    %80 = vector.shape_cast %79 : vector<1x8x1xf32> to vector<8x1xf32>
    %81 = arith.subf %78, %40 : vector<8x128xf32>
    %82 = vector.broadcast %80 : vector<8x1xf32> to vector<8x128xf32>
    %83 = arith.mulf %82, %81 : vector<8x128xf32>
    %84 = arith.addf %40, %83 : vector<8x128xf32>
    %85 = arith.subf %76, %44 : vector<8x128xf32>
    %86 = vector.broadcast %80 : vector<8x1xf32> to vector<8x128xf32>
    %87 = arith.mulf %86, %85 : vector<8x128xf32>
    %88 = arith.addf %44, %87 : vector<8x128xf32>
    %89 = vector.broadcast %80 : vector<8x1xf32> to vector<8x128xf32>
    %90 = arith.mulf %89, %78 : vector<8x128xf32>
    %c1_27 = arith.constant 1 : index
    %c0_28 = arith.constant 0 : index
    %c0_29 = arith.constant 0 : index
    %91 = vector.load %arg7[%c1_27, %c0_28, %c0_29] : memref<8x8x128xf32, #tpu.memory_space<vmem>>, vector<1x8x128xf32>
    %92 = vector.shape_cast %91 : vector<1x8x128xf32> to vector<8x128xf32>
    %93 = vector.shape_cast %90 : vector<8x128xf32> to vector<1x8x128xf32>
    tpu.vector_store %arg7[%c1_27, %c0_28, %c0_29], %93 {strides = array<i32>} : memref<8x8x128xf32, #tpu.memory_space<vmem>>, vector<1x8x128xf32>,
    %c2 = arith.constant 2 : index
    %c0_30 = arith.constant 0 : index
    %c0_31 = arith.constant 0 : index
    %94 = vector.load %arg2[%c2, %c0_30, %c0_31] : memref<8x8x512xf32, #tpu.memory_space<vmem>>, vector<1x8x512xf32>
    %95 = vector.shape_cast %94 : vector<1x8x512xf32> to vector<8x512xf32>
    %cst_32 = arith.constant dense<0.000000e+00> : vector<8x512xf32>
    %96 = tpu.matmul %84, %5, %cst_32 {dimension_numbers = #tpu.dot_dimension_numbers<[1], [0], [0], [1], [0, 0, 1, 1], [], []>} : vector<8x128xf32>, vector<128x512xf32>, vector<8x512xf32> -> vector<8x512xf32>
    %97 = arith.addf %95, %96 : vector<8x512xf32>
    %98 = vector.extract_strided_slice %97 {offsets = [0, 0], sizes = [8, 128], strides = [1, 1]} : vector<8x512xf32> to vector<8x128xf32>
    %99 = arith.negf %98 : vector<8x128xf32>
    %100 = math.exp %99 : vector<8x128xf32>
    %cst_33 = arith.constant 1.000000e+00 : f32
    %101 = vector.broadcast %cst_33 : f32 to vector<8x128xf32>
    %102 = arith.addf %101, %100 : vector<8x128xf32>
    %103 = arith.divf %101, %102 : vector<8x128xf32>
    %104 = vector.extract_strided_slice %97 {offsets = [0, 128], sizes = [8, 128], strides = [1, 1]} : vector<8x512xf32> to vector<8x128xf32>
    %105 = arith.negf %104 : vector<8x128xf32>
    %106 = math.exp %105 : vector<8x128xf32>
    %cst_34 = arith.constant 1.000000e+00 : f32
    %107 = vector.broadcast %cst_34 : f32 to vector<8x128xf32>
    %108 = arith.addf %107, %106 : vector<8x128xf32>
    %109 = arith.divf %107, %108 : vector<8x128xf32>
    %110 = vector.extract_strided_slice %97 {offsets = [0, 256], sizes = [8, 128], strides = [1, 1]} : vector<8x512xf32> to vector<8x128xf32>
    %111 = math.tanh %110 : vector<8x128xf32>
    %112 = vector.extract_strided_slice %97 {offsets = [0, 384], sizes = [8, 128], strides = [1, 1]} : vector<8x512xf32> to vector<8x128xf32>
    %113 = arith.negf %112 : vector<8x128xf32>
    %114 = math.exp %113 : vector<8x128xf32>
    %cst_35 = arith.constant 1.000000e+00 : f32
    %115 = vector.broadcast %cst_35 : f32 to vector<8x128xf32>
    %116 = arith.addf %115, %114 : vector<8x128xf32>
    %117 = arith.divf %115, %116 : vector<8x128xf32>
    %118 = arith.mulf %109, %88 : vector<8x128xf32>
    %119 = arith.mulf %103, %111 : vector<8x128xf32>
    %120 = arith.addf %118, %119 : vector<8x128xf32>
    %121 = math.tanh %120 : vector<8x128xf32>
    %122 = arith.mulf %117, %121 : vector<8x128xf32>
    %c2_36 = arith.constant 2 : index
    %c0_37 = arith.constant 0 : index
    %c0_38 = arith.constant 0 : index
    %123 = vector.load %arg3[%c2_36, %c0_37, %c0_38] : memref<8x8x1xf32, #tpu.memory_space<vmem>>, vector<1x8x1xf32>
    %124 = vector.shape_cast %123 : vector<1x8x1xf32> to vector<8x1xf32>
    %125 = arith.subf %122, %84 : vector<8x128xf32>
    %126 = vector.broadcast %124 : vector<8x1xf32> to vector<8x128xf32>
    %127 = arith.mulf %126, %125 : vector<8x128xf32>
    %128 = arith.addf %84, %127 : vector<8x128xf32>
    %129 = arith.subf %120, %88 : vector<8x128xf32>
    %130 = vector.broadcast %124 : vector<8x1xf32> to vector<8x128xf32>
    %131 = arith.mulf %130, %129 : vector<8x128xf32>
    %132 = arith.addf %88, %131 : vector<8x128xf32>
    %133 = vector.broadcast %124 : vector<8x1xf32> to vector<8x128xf32>
    %134 = arith.mulf %133, %122 : vector<8x128xf32>
    %c2_39 = arith.constant 2 : index
    %c0_40 = arith.constant 0 : index
    %c0_41 = arith.constant 0 : index
    %135 = vector.load %arg7[%c2_39, %c0_40, %c0_41] : memref<8x8x128xf32, #tpu.memory_space<vmem>>, vector<1x8x128xf32>
    %136 = vector.shape_cast %135 : vector<1x8x128xf32> to vector<8x128xf32>
    %137 = vector.shape_cast %134 : vector<8x128xf32> to vector<1x8x128xf32>
    tpu.vector_store %arg7[%c2_39, %c0_40, %c0_41], %137 {strides = array<i32>} : memref<8x8x128xf32, #tpu.memory_space<vmem>>, vector<1x8x128xf32>,
    %c3 = arith.constant 3 : index
    %c0_42 = arith.constant 0 : index
    %c0_43 = arith.constant 0 : index
    %138 = vector.load %arg2[%c3, %c0_42, %c0_43] : memref<8x8x512xf32, #tpu.memory_space<vmem>>, vector<1x8x512xf32>
    %139 = vector.shape_cast %138 : vector<1x8x512xf32> to vector<8x512xf32>
    %cst_44 = arith.constant dense<0.000000e+00> : vector<8x512xf32>
    %140 = tpu.matmul %128, %5, %cst_44 {dimension_numbers = #tpu.dot_dimension_numbers<[1], [0], [0], [1], [0, 0, 1, 1], [], []>} : vector<8x128xf32>, vector<128x512xf32>, vector<8x512xf32> -> vector<8x512xf32>
    %141 = arith.addf %139, %140 : vector<8x512xf32>
    %142 = vector.extract_strided_slice %141 {offsets = [0, 0], sizes = [8, 128], strides = [1, 1]} : vector<8x512xf32> to vector<8x128xf32>
    %143 = arith.negf %142 : vector<8x128xf32>
    %144 = math.exp %143 : vector<8x128xf32>
    %cst_45 = arith.constant 1.000000e+00 : f32
    %145 = vector.broadcast %cst_45 : f32 to vector<8x128xf32>
    %146 = arith.addf %145, %144 : vector<8x128xf32>
    %147 = arith.divf %145, %146 : vector<8x128xf32>
    %148 = vector.extract_strided_slice %141 {offsets = [0, 128], sizes = [8, 128], strides = [1, 1]} : vector<8x512xf32> to vector<8x128xf32>
    %149 = arith.negf %148 : vector<8x128xf32>
    %150 = math.exp %149 : vector<8x128xf32>
    %cst_46 = arith.constant 1.000000e+00 : f32
    %151 = vector.broadcast %cst_46 : f32 to vector<8x128xf32>
    %152 = arith.addf %151, %150 : vector<8x128xf32>
    %153 = arith.divf %151, %152 : vector<8x128xf32>
    %154 = vector.extract_strided_slice %141 {offsets = [0, 256], sizes = [8, 128], strides = [1, 1]} : vector<8x512xf32> to vector<8x128xf32>
    %155 = math.tanh %154 : vector<8x128xf32>
    %156 = vector.extract_strided_slice %141 {offsets = [0, 384], sizes = [8, 128], strides = [1, 1]} : vector<8x512xf32> to vector<8x128xf32>
    %157 = arith.negf %156 : vector<8x128xf32>
    %158 = math.exp %157 : vector<8x128xf32>
    %cst_47 = arith.constant 1.000000e+00 : f32
    %159 = vector.broadcast %cst_47 : f32 to vector<8x128xf32>
    %160 = arith.addf %159, %158 : vector<8x128xf32>
    %161 = arith.divf %159, %160 : vector<8x128xf32>
    %162 = arith.mulf %153, %132 : vector<8x128xf32>
    %163 = arith.mulf %147, %155 : vector<8x128xf32>
    %164 = arith.addf %162, %163 : vector<8x128xf32>
    %165 = math.tanh %164 : vector<8x128xf32>
    %166 = arith.mulf %161, %165 : vector<8x128xf32>
    %c3_48 = arith.constant 3 : index
    %c0_49 = arith.constant 0 : index
    %c0_50 = arith.constant 0 : index
    %167 = vector.load %arg3[%c3_48, %c0_49, %c0_50] : memref<8x8x1xf32, #tpu.memory_space<vmem>>, vector<1x8x1xf32>
    %168 = vector.shape_cast %167 : vector<1x8x1xf32> to vector<8x1xf32>
    %169 = arith.subf %166, %128 : vector<8x128xf32>
    %170 = vector.broadcast %168 : vector<8x1xf32> to vector<8x128xf32>
    %171 = arith.mulf %170, %169 : vector<8x128xf32>
    %172 = arith.addf %128, %171 : vector<8x128xf32>
    %173 = arith.subf %164, %132 : vector<8x128xf32>
    %174 = vector.broadcast %168 : vector<8x1xf32> to vector<8x128xf32>
    %175 = arith.mulf %174, %173 : vector<8x128xf32>
    %176 = arith.addf %132, %175 : vector<8x128xf32>
    %177 = vector.broadcast %168 : vector<8x1xf32> to vector<8x128xf32>
    %178 = arith.mulf %177, %166 : vector<8x128xf32>
    %c3_51 = arith.constant 3 : index
    %c0_52 = arith.constant 0 : index
    %c0_53 = arith.constant 0 : index
    %179 = vector.load %arg7[%c3_51, %c0_52, %c0_53] : memref<8x8x128xf32, #tpu.memory_space<vmem>>, vector<1x8x128xf32>
    %180 = vector.shape_cast %179 : vector<1x8x128xf32> to vector<8x128xf32>
    %181 = vector.shape_cast %178 : vector<8x128xf32> to vector<1x8x128xf32>
    tpu.vector_store %arg7[%c3_51, %c0_52, %c0_53], %181 {strides = array<i32>} : memref<8x8x128xf32, #tpu.memory_space<vmem>>, vector<1x8x128xf32>,
    %c4 = arith.constant 4 : index
    %c0_54 = arith.constant 0 : index
    %c0_55 = arith.constant 0 : index
    %182 = vector.load %arg2[%c4, %c0_54, %c0_55] : memref<8x8x512xf32, #tpu.memory_space<vmem>>, vector<1x8x512xf32>
    %183 = vector.shape_cast %182 : vector<1x8x512xf32> to vector<8x512xf32>
    %cst_56 = arith.constant dense<0.000000e+00> : vector<8x512xf32>
    %184 = tpu.matmul %172, %5, %cst_56 {dimension_numbers = #tpu.dot_dimension_numbers<[1], [0], [0], [1], [0, 0, 1, 1], [], []>} : vector<8x128xf32>, vector<128x512xf32>, vector<8x512xf32> -> vector<8x512xf32>
    %185 = arith.addf %183, %184 : vector<8x512xf32>
    %186 = vector.extract_strided_slice %185 {offsets = [0, 0], sizes = [8, 128], strides = [1, 1]} : vector<8x512xf32> to vector<8x128xf32>
    %187 = arith.negf %186 : vector<8x128xf32>
    %188 = math.exp %187 : vector<8x128xf32>
    %cst_57 = arith.constant 1.000000e+00 : f32
    %189 = vector.broadcast %cst_57 : f32 to vector<8x128xf32>
    %190 = arith.addf %189, %188 : vector<8x128xf32>
    %191 = arith.divf %189, %190 : vector<8x128xf32>
    %192 = vector.extract_strided_slice %185 {offsets = [0, 128], sizes = [8, 128], strides = [1, 1]} : vector<8x512xf32> to vector<8x128xf32>
    %193 = arith.negf %192 : vector<8x128xf32>
    %194 = math.exp %193 : vector<8x128xf32>
    %cst_58 = arith.constant 1.000000e+00 : f32
    %195 = vector.broadcast %cst_58 : f32 to vector<8x128xf32>
    %196 = arith.addf %195, %194 : vector<8x128xf32>
    %197 = arith.divf %195, %196 : vector<8x128xf32>
    %198 = vector.extract_strided_slice %185 {offsets = [0, 256], sizes = [8, 128], strides = [1, 1]} : vector<8x512xf32> to vector<8x128xf32>
    %199 = math.tanh %198 : vector<8x128xf32>
    %200 = vector.extract_strided_slice %185 {offsets = [0, 384], sizes = [8, 128], strides = [1, 1]} : vector<8x512xf32> to vector<8x128xf32>
    %201 = arith.negf %200 : vector<8x128xf32>
    %202 = math.exp %201 : vector<8x128xf32>
    %cst_59 = arith.constant 1.000000e+00 : f32
    %203 = vector.broadcast %cst_59 : f32 to vector<8x128xf32>
    %204 = arith.addf %203, %202 : vector<8x128xf32>
    %205 = arith.divf %203, %204 : vector<8x128xf32>
    %206 = arith.mulf %197, %176 : vector<8x128xf32>
    %207 = arith.mulf %191, %199 : vector<8x128xf32>
    %208 = arith.addf %206, %207 : vector<8x128xf32>
    %209 = math.tanh %208 : vector<8x128xf32>
    %210 = arith.mulf %205, %209 : vector<8x128xf32>
    %c4_60 = arith.constant 4 : index
    %c0_61 = arith.constant 0 : index
    %c0_62 = arith.constant 0 : index
    %211 = vector.load %arg3[%c4_60, %c0_61, %c0_62] : memref<8x8x1xf32, #tpu.memory_space<vmem>>, vector<1x8x1xf32>
    %212 = vector.shape_cast %211 : vector<1x8x1xf32> to vector<8x1xf32>
    %213 = arith.subf %210, %172 : vector<8x128xf32>
    %214 = vector.broadcast %212 : vector<8x1xf32> to vector<8x128xf32>
    %215 = arith.mulf %214, %213 : vector<8x128xf32>
    %216 = arith.addf %172, %215 : vector<8x128xf32>
    %217 = arith.subf %208, %176 : vector<8x128xf32>
    %218 = vector.broadcast %212 : vector<8x1xf32> to vector<8x128xf32>
    %219 = arith.mulf %218, %217 : vector<8x128xf32>
    %220 = arith.addf %176, %219 : vector<8x128xf32>
    %221 = vector.broadcast %212 : vector<8x1xf32> to vector<8x128xf32>
    %222 = arith.mulf %221, %210 : vector<8x128xf32>
    %c4_63 = arith.constant 4 : index
    %c0_64 = arith.constant 0 : index
    %c0_65 = arith.constant 0 : index
    %223 = vector.load %arg7[%c4_63, %c0_64, %c0_65] : memref<8x8x128xf32, #tpu.memory_space<vmem>>, vector<1x8x128xf32>
    %224 = vector.shape_cast %223 : vector<1x8x128xf32> to vector<8x128xf32>
    %225 = vector.shape_cast %222 : vector<8x128xf32> to vector<1x8x128xf32>
    tpu.vector_store %arg7[%c4_63, %c0_64, %c0_65], %225 {strides = array<i32>} : memref<8x8x128xf32, #tpu.memory_space<vmem>>, vector<1x8x128xf32>,
    %c5 = arith.constant 5 : index
    %c0_66 = arith.constant 0 : index
    %c0_67 = arith.constant 0 : index
    %226 = vector.load %arg2[%c5, %c0_66, %c0_67] : memref<8x8x512xf32, #tpu.memory_space<vmem>>, vector<1x8x512xf32>
    %227 = vector.shape_cast %226 : vector<1x8x512xf32> to vector<8x512xf32>
    %cst_68 = arith.constant dense<0.000000e+00> : vector<8x512xf32>
    %228 = tpu.matmul %216, %5, %cst_68 {dimension_numbers = #tpu.dot_dimension_numbers<[1], [0], [0], [1], [0, 0, 1, 1], [], []>} : vector<8x128xf32>, vector<128x512xf32>, vector<8x512xf32> -> vector<8x512xf32>
    %229 = arith.addf %227, %228 : vector<8x512xf32>
    %230 = vector.extract_strided_slice %229 {offsets = [0, 0], sizes = [8, 128], strides = [1, 1]} : vector<8x512xf32> to vector<8x128xf32>
    %231 = arith.negf %230 : vector<8x128xf32>
    %232 = math.exp %231 : vector<8x128xf32>
    %cst_69 = arith.constant 1.000000e+00 : f32
    %233 = vector.broadcast %cst_69 : f32 to vector<8x128xf32>
    %234 = arith.addf %233, %232 : vector<8x128xf32>
    %235 = arith.divf %233, %234 : vector<8x128xf32>
    %236 = vector.extract_strided_slice %229 {offsets = [0, 128], sizes = [8, 128], strides = [1, 1]} : vector<8x512xf32> to vector<8x128xf32>
    %237 = arith.negf %236 : vector<8x128xf32>
    %238 = math.exp %237 : vector<8x128xf32>
    %cst_70 = arith.constant 1.000000e+00 : f32
    %239 = vector.broadcast %cst_70 : f32 to vector<8x128xf32>
    %240 = arith.addf %239, %238 : vector<8x128xf32>
    %241 = arith.divf %239, %240 : vector<8x128xf32>
    %242 = vector.extract_strided_slice %229 {offsets = [0, 256], sizes = [8, 128], strides = [1, 1]} : vector<8x512xf32> to vector<8x128xf32>
    %243 = math.tanh %242 : vector<8x128xf32>
    %244 = vector.extract_strided_slice %229 {offsets = [0, 384], sizes = [8, 128], strides = [1, 1]} : vector<8x512xf32> to vector<8x128xf32>
    %245 = arith.negf %244 : vector<8x128xf32>
    %246 = math.exp %245 : vector<8x128xf32>
    %cst_71 = arith.constant 1.000000e+00 : f32
    %247 = vector.broadcast %cst_71 : f32 to vector<8x128xf32>
    %248 = arith.addf %247, %246 : vector<8x128xf32>
    %249 = arith.divf %247, %248 : vector<8x128xf32>
    %250 = arith.mulf %241, %220 : vector<8x128xf32>
    %251 = arith.mulf %235, %243 : vector<8x128xf32>
    %252 = arith.addf %250, %251 : vector<8x128xf32>
    %253 = math.tanh %252 : vector<8x128xf32>
    %254 = arith.mulf %249, %253 : vector<8x128xf32>
    %c5_72 = arith.constant 5 : index
    %c0_73 = arith.constant 0 : index
    %c0_74 = arith.constant 0 : index
    %255 = vector.load %arg3[%c5_72, %c0_73, %c0_74] : memref<8x8x1xf32, #tpu.memory_space<vmem>>, vector<1x8x1xf32>
    %256 = vector.shape_cast %255 : vector<1x8x1xf32> to vector<8x1xf32>
    %257 = arith.subf %254, %216 : vector<8x128xf32>
    %258 = vector.broadcast %256 : vector<8x1xf32> to vector<8x128xf32>
    %259 = arith.mulf %258, %257 : vector<8x128xf32>
    %260 = arith.addf %216, %259 : vector<8x128xf32>
    %261 = arith.subf %252, %220 : vector<8x128xf32>
    %262 = vector.broadcast %256 : vector<8x1xf32> to vector<8x128xf32>
    %263 = arith.mulf %262, %261 : vector<8x128xf32>
    %264 = arith.addf %220, %263 : vector<8x128xf32>
    %265 = vector.broadcast %256 : vector<8x1xf32> to vector<8x128xf32>
    %266 = arith.mulf %265, %254 : vector<8x128xf32>
    %c5_75 = arith.constant 5 : index
    %c0_76 = arith.constant 0 : index
    %c0_77 = arith.constant 0 : index
    %267 = vector.load %arg7[%c5_75, %c0_76, %c0_77] : memref<8x8x128xf32, #tpu.memory_space<vmem>>, vector<1x8x128xf32>
    %268 = vector.shape_cast %267 : vector<1x8x128xf32> to vector<8x128xf32>
    %269 = vector.shape_cast %266 : vector<8x128xf32> to vector<1x8x128xf32>
    tpu.vector_store %arg7[%c5_75, %c0_76, %c0_77], %269 {strides = array<i32>} : memref<8x8x128xf32, #tpu.memory_space<vmem>>, vector<1x8x128xf32>,
    %c6 = arith.constant 6 : index
    %c0_78 = arith.constant 0 : index
    %c0_79 = arith.constant 0 : index
    %270 = vector.load %arg2[%c6, %c0_78, %c0_79] : memref<8x8x512xf32, #tpu.memory_space<vmem>>, vector<1x8x512xf32>
    %271 = vector.shape_cast %270 : vector<1x8x512xf32> to vector<8x512xf32>
    %cst_80 = arith.constant dense<0.000000e+00> : vector<8x512xf32>
    %272 = tpu.matmul %260, %5, %cst_80 {dimension_numbers = #tpu.dot_dimension_numbers<[1], [0], [0], [1], [0, 0, 1, 1], [], []>} : vector<8x128xf32>, vector<128x512xf32>, vector<8x512xf32> -> vector<8x512xf32>
    %273 = arith.addf %271, %272 : vector<8x512xf32>
    %274 = vector.extract_strided_slice %273 {offsets = [0, 0], sizes = [8, 128], strides = [1, 1]} : vector<8x512xf32> to vector<8x128xf32>
    %275 = arith.negf %274 : vector<8x128xf32>
    %276 = math.exp %275 : vector<8x128xf32>
    %cst_81 = arith.constant 1.000000e+00 : f32
    %277 = vector.broadcast %cst_81 : f32 to vector<8x128xf32>
    %278 = arith.addf %277, %276 : vector<8x128xf32>
    %279 = arith.divf %277, %278 : vector<8x128xf32>
    %280 = vector.extract_strided_slice %273 {offsets = [0, 128], sizes = [8, 128], strides = [1, 1]} : vector<8x512xf32> to vector<8x128xf32>
    %281 = arith.negf %280 : vector<8x128xf32>
    %282 = math.exp %281 : vector<8x128xf32>
    %cst_82 = arith.constant 1.000000e+00 : f32
    %283 = vector.broadcast %cst_82 : f32 to vector<8x128xf32>
    %284 = arith.addf %283, %282 : vector<8x128xf32>
    %285 = arith.divf %283, %284 : vector<8x128xf32>
    %286 = vector.extract_strided_slice %273 {offsets = [0, 256], sizes = [8, 128], strides = [1, 1]} : vector<8x512xf32> to vector<8x128xf32>
    %287 = math.tanh %286 : vector<8x128xf32>
    %288 = vector.extract_strided_slice %273 {offsets = [0, 384], sizes = [8, 128], strides = [1, 1]} : vector<8x512xf32> to vector<8x128xf32>
    %289 = arith.negf %288 : vector<8x128xf32>
    %290 = math.exp %289 : vector<8x128xf32>
    %cst_83 = arith.constant 1.000000e+00 : f32
    %291 = vector.broadcast %cst_83 : f32 to vector<8x128xf32>
    %292 = arith.addf %291, %290 : vector<8x128xf32>
    %293 = arith.divf %291, %292 : vector<8x128xf32>
    %294 = arith.mulf %285, %264 : vector<8x128xf32>
    %295 = arith.mulf %279, %287 : vector<8x128xf32>
    %296 = arith.addf %294, %295 : vector<8x128xf32>
    %297 = math.tanh %296 : vector<8x128xf32>
    %298 = arith.mulf %293, %297 : vector<8x128xf32>
    %c6_84 = arith.constant 6 : index
    %c0_85 = arith.constant 0 : index
    %c0_86 = arith.constant 0 : index
    %299 = vector.load %arg3[%c6_84, %c0_85, %c0_86] : memref<8x8x1xf32, #tpu.memory_space<vmem>>, vector<1x8x1xf32>
    %300 = vector.shape_cast %299 : vector<1x8x1xf32> to vector<8x1xf32>
    %301 = arith.subf %298, %260 : vector<8x128xf32>
    %302 = vector.broadcast %300 : vector<8x1xf32> to vector<8x128xf32>
    %303 = arith.mulf %302, %301 : vector<8x128xf32>
    %304 = arith.addf %260, %303 : vector<8x128xf32>
    %305 = arith.subf %296, %264 : vector<8x128xf32>
    %306 = vector.broadcast %300 : vector<8x1xf32> to vector<8x128xf32>
    %307 = arith.mulf %306, %305 : vector<8x128xf32>
    %308 = arith.addf %264, %307 : vector<8x128xf32>
    %309 = vector.broadcast %300 : vector<8x1xf32> to vector<8x128xf32>
    %310 = arith.mulf %309, %298 : vector<8x128xf32>
    %c6_87 = arith.constant 6 : index
    %c0_88 = arith.constant 0 : index
    %c0_89 = arith.constant 0 : index
    %311 = vector.load %arg7[%c6_87, %c0_88, %c0_89] : memref<8x8x128xf32, #tpu.memory_space<vmem>>, vector<1x8x128xf32>
    %312 = vector.shape_cast %311 : vector<1x8x128xf32> to vector<8x128xf32>
    %313 = vector.shape_cast %310 : vector<8x128xf32> to vector<1x8x128xf32>
    tpu.vector_store %arg7[%c6_87, %c0_88, %c0_89], %313 {strides = array<i32>} : memref<8x8x128xf32, #tpu.memory_space<vmem>>, vector<1x8x128xf32>,
    %c7 = arith.constant 7 : index
    %c0_90 = arith.constant 0 : index
    %c0_91 = arith.constant 0 : index
    %314 = vector.load %arg2[%c7, %c0_90, %c0_91] : memref<8x8x512xf32, #tpu.memory_space<vmem>>, vector<1x8x512xf32>
    %315 = vector.shape_cast %314 : vector<1x8x512xf32> to vector<8x512xf32>
    %cst_92 = arith.constant dense<0.000000e+00> : vector<8x512xf32>
    %316 = tpu.matmul %304, %5, %cst_92 {dimension_numbers = #tpu.dot_dimension_numbers<[1], [0], [0], [1], [0, 0, 1, 1], [], []>} : vector<8x128xf32>, vector<128x512xf32>, vector<8x512xf32> -> vector<8x512xf32>
    %317 = arith.addf %315, %316 : vector<8x512xf32>
    %318 = vector.extract_strided_slice %317 {offsets = [0, 0], sizes = [8, 128], strides = [1, 1]} : vector<8x512xf32> to vector<8x128xf32>
    %319 = arith.negf %318 : vector<8x128xf32>
    %320 = math.exp %319 : vector<8x128xf32>
    %cst_93 = arith.constant 1.000000e+00 : f32
    %321 = vector.broadcast %cst_93 : f32 to vector<8x128xf32>
    %322 = arith.addf %321, %320 : vector<8x128xf32>
    %323 = arith.divf %321, %322 : vector<8x128xf32>
    %324 = vector.extract_strided_slice %317 {offsets = [0, 128], sizes = [8, 128], strides = [1, 1]} : vector<8x512xf32> to vector<8x128xf32>
    %325 = arith.negf %324 : vector<8x128xf32>
    %326 = math.exp %325 : vector<8x128xf32>
    %cst_94 = arith.constant 1.000000e+00 : f32
    %327 = vector.broadcast %cst_94 : f32 to vector<8x128xf32>
    %328 = arith.addf %327, %326 : vector<8x128xf32>
    %329 = arith.divf %327, %328 : vector<8x128xf32>
    %330 = vector.extract_strided_slice %317 {offsets = [0, 256], sizes = [8, 128], strides = [1, 1]} : vector<8x512xf32> to vector<8x128xf32>
    %331 = math.tanh %330 : vector<8x128xf32>
    %332 = vector.extract_strided_slice %317 {offsets = [0, 384], sizes = [8, 128], strides = [1, 1]} : vector<8x512xf32> to vector<8x128xf32>
    %333 = arith.negf %332 : vector<8x128xf32>
    %334 = math.exp %333 : vector<8x128xf32>
    %cst_95 = arith.constant 1.000000e+00 : f32
    %335 = vector.broadcast %cst_95 : f32 to vector<8x128xf32>
    %336 = arith.addf %335, %334 : vector<8x128xf32>
    %337 = arith.divf %335, %336 : vector<8x128xf32>
    %338 = arith.mulf %329, %308 : vector<8x128xf32>
    %339 = arith.mulf %323, %331 : vector<8x128xf32>
    %340 = arith.addf %338, %339 : vector<8x128xf32>
    %341 = math.tanh %340 : vector<8x128xf32>
    %342 = arith.mulf %337, %341 : vector<8x128xf32>
    %c7_96 = arith.constant 7 : index
    %c0_97 = arith.constant 0 : index
    %c0_98 = arith.constant 0 : index
    %343 = vector.load %arg3[%c7_96, %c0_97, %c0_98] : memref<8x8x1xf32, #tpu.memory_space<vmem>>, vector<1x8x1xf32>
    %344 = vector.shape_cast %343 : vector<1x8x1xf32> to vector<8x1xf32>
    %345 = arith.subf %342, %304 : vector<8x128xf32>
    %346 = vector.broadcast %344 : vector<8x1xf32> to vector<8x128xf32>
    %347 = arith.mulf %346, %345 : vector<8x128xf32>
    %348 = arith.addf %304, %347 : vector<8x128xf32>
    %349 = arith.subf %340, %308 : vector<8x128xf32>
    %350 = vector.broadcast %344 : vector<8x1xf32> to vector<8x128xf32>
    %351 = arith.mulf %350, %349 : vector<8x128xf32>
    %352 = arith.addf %308, %351 : vector<8x128xf32>
    %353 = vector.broadcast %344 : vector<8x1xf32> to vector<8x128xf32>
    %354 = arith.mulf %353, %342 : vector<8x128xf32>
    %c7_99 = arith.constant 7 : index
    %c0_100 = arith.constant 0 : index
    %c0_101 = arith.constant 0 : index
    %355 = vector.load %arg7[%c7_99, %c0_100, %c0_101] : memref<8x8x128xf32, #tpu.memory_space<vmem>>, vector<1x8x128xf32>
    %356 = vector.shape_cast %355 : vector<1x8x128xf32> to vector<8x128xf32>
    %357 = vector.shape_cast %354 : vector<8x128xf32> to vector<1x8x128xf32>
    tpu.vector_store %arg7[%c7_99, %c0_100, %c0_101], %357 {strides = array<i32>} : memref<8x8x128xf32, #tpu.memory_space<vmem>>, vector<1x8x128xf32>,
    %c0_102 = arith.constant 0 : index
    %c0_103 = arith.constant 0 : index
    %358 = vector.load %arg8[%c0_102, %c0_103] : memref<8x128xf32, #tpu.memory_space<vmem>>, vector<8x128xf32>
    tpu.vector_store %arg8[%c0_102, %c0_103], %348 {strides = array<i32>} : memref<8x128xf32, #tpu.memory_space<vmem>>, vector<8x128xf32>,
    %c0_104 = arith.constant 0 : index
    %c0_105 = arith.constant 0 : index
    %359 = vector.load %arg9[%c0_104, %c0_105] : memref<8x128xf32, #tpu.memory_space<vmem>>, vector<8x128xf32>
    tpu.vector_store %arg9[%c0_104, %c0_105], %352 {strides = array<i32>} : memref<8x128xf32, #tpu.memory_space<vmem>>, vector<8x128xf32>,
    return
  }
  func.func @transform_0(%arg0: i32, %arg1: i32) -> (i32, i32, i32) {
    %c0_i32 = arith.constant 0 : i32
    %c0_i32_0 = arith.constant 0 : i32
    return %arg1, %arg0, %c0_i32 : i32, i32, i32
  }
  func.func @transform_1(%arg0: i32, %arg1: i32) -> (i32, i32, i32) {
    %c0_i32 = arith.constant 0 : i32
    %c0_i32_0 = arith.constant 0 : i32
    return %arg1, %arg0, %c0_i32 : i32, i32, i32
  }
  func.func @transform_2(%arg0: i32, %arg1: i32) -> (i32, i32) {
    %c0_i32 = arith.constant 0 : i32
    %c0_i32_0 = arith.constant 0 : i32
    return %arg0, %c0_i32 : i32, i32
  }
  func.func @transform_3(%arg0: i32, %arg1: i32) -> (i32, i32) {
    %c0_i32 = arith.constant 0 : i32
    %c0_i32_0 = arith.constant 0 : i32
    return %arg0, %c0_i32 : i32, i32
  }
  func.func @transform_4(%arg0: i32, %arg1: i32) -> (i32, i32) {
    %c0_i32 = arith.constant 0 : i32
    %c0_i32_0 = arith.constant 0 : i32
    %c0_i32_1 = arith.constant 0 : i32
    return %c0_i32, %c0_i32_0 : i32, i32
  }
  func.func @transform_5(%arg0: i32, %arg1: i32) -> (i32, i32, i32) {
    %c0_i32 = arith.constant 0 : i32
    %c0_i32_0 = arith.constant 0 : i32
    return %arg1, %arg0, %c0_i32 : i32, i32, i32
  }
  func.func @transform_6(%arg0: i32, %arg1: i32) -> (i32, i32) {
    %c0_i32 = arith.constant 0 : i32
    %c0_i32_0 = arith.constant 0 : i32
    return %arg0, %c0_i32 : i32, i32
  }
  func.func @transform_7(%arg0: i32, %arg1: i32) -> (i32, i32) {
    %c0_i32 = arith.constant 0 : i32
    %c0_i32_0 = arith.constant 0 : i32
    return %arg0, %c0_i32 : i32, i32
  }
}

</mosaic_0001>

<llo_original>
// kernel: tpu_custom_call.1
$region0: #{tpu_custom_call.1}
  #allocation0 [shape = 'u32[]', space=smem, size = 0x4, offset = 0x4, fixed_abs, tag = 'smem constant byte address 0x4 - core index']
  #allocation1 [shape = 'u32[144,128]{1,0:T(1,128)}', space=vmem, size = 0x12000, scoped, tag = 'internal scratch']
  %s0 = inlined_call_operand.hbm [shape: f32[8,8,512], index: 0, kind: input, shape index: {}]
  %s1 = inlined_call_operand.vmem [shape: f32[8,8,1], index: 1, kind: input, shape index: {}]
  %s2 = inlined_call_operand.vmem [shape: f32[8,128], index: 2, kind: input, shape index: {}]
  %s3 = inlined_call_operand.vmem [shape: f32[8,128], index: 3, kind: input, shape index: {}]
  %s4 = inlined_call_operand.hbm [shape: f32[128,512], index: 4, kind: input, shape index: {}]
  %s5 = inlined_call_operand.hbm [shape: f32[8,8,128], index: 5, kind: output, shape index: {0}]
  %s6 = inlined_call_operand.hbm [shape: f32[8,128], index: 6, kind: output, shape index: {1}]
  %s7 = inlined_call_operand.hbm [shape: f32[8,128], index: 7, kind: output, shape index: {2}]
  %8 = xla_tuple %s5, %s6, %s7
  %s9 = sld [smem:[#allocation0]]
  $region58: #{tpu_custom_call.1} parent=0
    _
  %s11 = ssub.s32 1, %s9
  %s12 = scalar_select 0, %s11, %s9
  $region1: #{tpu_custom_call.1} parent=0
    #allocation2 [shape = 'u8[131072]{0}', space=vmem, size = 0x20000, scoped, tag = 'input window, operand 0, single buffered']
    #allocation3 [shape = 's32[1]{0}', space=sflag, size = 0x4, scoped, tag = 'scoped memory for tpu_custom_call.1']
    #allocation4 [shape = 's32[1]{0}', space=sflag, size = 0x4, scoped, tag = 'scoped memory for tpu_custom_call.1']
    #allocation5 [shape = 'u8[262144]{0}', space=vmem, size = 0x40000, scoped, tag = 'input window, operand 4, single buffered']
    #allocation6 [shape = 's32[1]{0}', space=sflag, size = 0x4, scoped, tag = 'scoped memory for tpu_custom_call.1']
    #allocation7 [shape = 'u8[32768]{0}', space=vmem, size = 0x8000, scoped, tag = 'output window, operand 0, single buffered']
    #allocation8 [shape = 'u8[4096]{0}', space=vmem, size = 0x1000, scoped, tag = 'output window, operand 1, single buffered']
    #allocation9 [shape = 's32[1]{0}', space=sflag, size = 0x4, scoped, tag = 'scoped memory for tpu_custom_call.1']
    #allocation10 [shape = 'u8[4096]{0}', space=vmem, size = 0x1000, scoped, tag = 'output window, operand 2, single buffered']
    %13 = vsyncpa [#allocation3], 0
    %14 = vsyncpa [#allocation6], 0
    %15 = vsyncpa [#allocation4], 0
    %16 = vsyncpa [#allocation9], 0
    // Predicated region
    $region2: #{tpu_custom_call.1} parent=1 // pred_check
      _
    $region3: #{tpu_custom_call.1} parent=1 // pred_check_branch
      %18 = sbr.rel (0) target = $region5
    $region4: #{tpu_custom_call.1} parent=1 // pred_region
      %s20 = ssub.s32 4096, 4096
      %21 = vsyncadd [#allocation3], %s20
      %s22 = sshll.u32 [#allocation2], 4
      %s23 = int_to_ptr.vmem [resolvable:$true] %s22
      %28 = dma.hbm_to_vmem [thread:$0]  %s0, 4096, %s23, [#allocation3], 512, 512, 32
    $region5: #{tpu_custom_call.1} parent=1 // pred_fallthru
      _
    // Predicated region
    $region6: #{tpu_custom_call.1} parent=1 // pred_check
      _
    $region7: #{tpu_custom_call.1} parent=1 // pred_check_branch
      %30 = sbr.rel (0) target = $region9
    $region8: #{tpu_custom_call.1} parent=1 // pred_region
      _
    $region9: #{tpu_custom_call.1} parent=1 // pred_fallthru
      _
    // Predicated region
    $region10: #{tpu_custom_call.1} parent=1 // pred_check
      _
    $region11: #{tpu_custom_call.1} parent=1 // pred_check_branch
      %32 = sbr.rel (0) target = $region13
    $region12: #{tpu_custom_call.1} parent=1 // pred_region
      _
    $region13: #{tpu_custom_call.1} parent=1 // pred_fallthru
      _
    // Predicated region
    $region14: #{tpu_custom_call.1} parent=1 // pred_check
      _
    $region15: #{tpu_custom_call.1} parent=1 // pred_check_branch
      %34 = sbr.rel (0) target = $region17
    $region16: #{tpu_custom_call.1} parent=1 // pred_region
      _
    $region17: #{tpu_custom_call.1} parent=1 // pred_fallthru
      _
    // Predicated region
    $region18: #{tpu_custom_call.1} parent=1 // pred_check
      _
    $region19: #{tpu_custom_call.1} parent=1 // pred_check_branch
      %36 = sbr.rel (0) target = $region21
    $region20: #{tpu_custom_call.1} parent=1 // pred_region
      %s38 = ssub.s32 8192, 8192
      %39 = vsyncadd [#allocation6], %s38
      %s40 = sshll.u32 [#allocation5], 4
      %s41 = int_to_ptr.vmem [resolvable:$true] %s40
      %46 = dma.hbm_to_vmem [thread:$0]  %s4, 8192, %s41, [#allocation6], 512, 512, 32
    $region21: #{tpu_custom_call.1} parent=1 // pred_fallthru
      _
    // Predicated region
    $region22: #{tpu_custom_call.1} parent=1 // pred_check
      _
    $region23: #{tpu_custom_call.1} parent=1 // pred_check_branch
      %48 = sbr.rel (0) target = $region25
    $region24: #{tpu_custom_call.1} parent=1 // pred_region
      %49 = dma.done [#allocation3], 4096
    $region25: #{tpu_custom_call.1} parent=1 // pred_fallthru
      _
    // Predicated region
    $region26: #{tpu_custom_call.1} parent=1 // pred_check
      _
    $region27: #{tpu_custom_call.1} parent=1 // pred_check_branch
      %51 = sbr.rel (0) target = $region29
    $region28: #{tpu_custom_call.1} parent=1 // pred_region
      %52 = dma.done [#allocation6], 8192
    $region29: #{tpu_custom_call.1} parent=1 // pred_fallthru
      _
    %p53 = scmp.eq.s32.totalorder 0, 0
    // Predicated region
    $region30: #{tpu_custom_call.1} parent=1 // pred_check
      %p54 = pneg %p53
    $region31: #{tpu_custom_call.1} parent=1 // pred_check_branch
      %56 = sbr.rel (%p54) target = $region33
    $region32: #{tpu_custom_call.1} parent=1 // pred_region
      %v57 = vld [vmem:[%s2] sm:$0xff]
      %58 = vst [vmem:[#allocation8] sm:$0xff] %v57
      %v59 = vld [vmem:[%s3] sm:$0xff]
      %60 = vst [vmem:[#allocation10] sm:$0xff] %v59
    $region33: #{tpu_custom_call.1} parent=1 // pred_fallthru
      _
    %v61 = vld [vmem:[#allocation8] sm:$0xff]
    %v62 = vld [vmem:[#allocation10] sm:$0xff]
    %v63 = vld [vmem:[#allocation5] sm:$0xff]
    %v64 = vld [vmem:[#allocation5 + $0x8] sm:$0xff]
    %v65 = vld [vmem:[#allocation5 + $0x10] sm:$0xff]
    %v66 = vld [vmem:[#allocation5 + $0x18] sm:$0xff]
    %v67 = vld [vmem:[#allocation5 + $0x20] sm:$0xff]
    %v68 = vld [vmem:[#allocation5 + $0x28] sm:$0xff]
    %v69 = vld [vmem:[#allocation5 + $0x30] sm:$0xff]
    %v70 = vld [vmem:[#allocation5 + $0x38] sm:$0xff]
    %v71 = vld [vmem:[#allocation5 + $0x40] sm:$0xff]
    %v72 = vld [vmem:[#allocation5 + $0x48] sm:$0xff]
    %v73 = vld [vmem:[#allocation5 + $0x50] sm:$0xff]
    %v74 = vld [vmem:[#allocation5 + $0x58] sm:$0xff]
    %v75 = vld [vmem:[#allocation5 + $0x60] sm:$0xff]
    %v76 = vld [vmem:[#allocation5 + $0x68] sm:$0xff]
    %v77 = vld [vmem:[#allocation5 + $0x70] sm:$0xff]
    %v78 = vld [vmem:[#allocation5 + $0x78] sm:$0xff]
    %v79 = vld [vmem:[#allocation5 + $0x80] sm:$0xff]
    %v80 = vld [vmem:[#allocation5 + $0x88] sm:$0xff]
    %v81 = vld [vmem:[#allocation5 + $0x90] sm:$0xff]
    %v82 = vld [vmem:[#allocation5 + $0x98] sm:$0xff]
    %v83 = vld [vmem:[#allocation5 + $0xa0] sm:$0xff]
    %v84 = vld [vmem:[#allocation5 + $0xa8] sm:$0xff]
    %v85 = vld [vmem:[#allocation5 + $0xb0] sm:$0xff]
    %v86 = vld [vmem:[#allocation5 + $0xb8] sm:$0xff]
    %v87 = vld [vmem:[#allocation5 + $0xc0] sm:$0xff]
    %v88 = vld [vmem:[#allocation5 + $0xc8] sm:$0xff]
    %v89 = vld [vmem:[#allocation5 + $0xd0] sm:$0xff]
    %v90 = vld [vmem:[#allocation5 + $0xd8] sm:$0xff]
    %v91 = vld [vmem:[#allocation5 + $0xe0] sm:$0xff]
    %v92 = vld [vmem:[#allocation5 + $0xe8] sm:$0xff]
    %v93 = vld [vmem:[#allocation5 + $0xf0] sm:$0xff]
    %v94 = vld [vmem:[#allocation5 + $0xf8] sm:$0xff]
    %v95 = vld [vmem:[#allocation5 + $0x100] sm:$0xff]
    %v96 = vld [vmem:[#allocation5 + $0x108] sm:$0xff]
    %v97 = vld [vmem:[#allocation5 + $0x110] sm:$0xff]
    %v98 = vld [vmem:[#allocation5 + $0x118] sm:$0xff]
    %v99 = vld [vmem:[#allocation5 + $0x120] sm:$0xff]
    %v100 = vld [vmem:[#allocation5 + $0x128] sm:$0xff]
    %v101 = vld [vmem:[#allocation5 + $0x130] sm:$0xff]
    %v102 = vld [vmem:[#allocation5 + $0x138] sm:$0xff]
    %v103 = vld [vmem:[#allocation5 + $0x140] sm:$0xff]
    %v104 = vld [vmem:[#allocation5 + $0x148] sm:$0xff]
    %v105 = vld [vmem:[#allocation5 + $0x150] sm:$0xff]
    %v106 = vld [vmem:[#allocation5 + $0x158] sm:$0xff]
    %v107 = vld [vmem:[#allocation5 + $0x160] sm:$0xff]
    %v108 = vld [vmem:[#allocation5 + $0x168] sm:$0xff]
    %v109 = vld [vmem:[#allocation5 + $0x170] sm:$0xff]
    %v110 = vld [vmem:[#allocation5 + $0x178] sm:$0xff]
    %v111 = vld [vmem:[#allocation5 + $0x180] sm:$0xff]
    %v112 = vld [vmem:[#allocation5 + $0x188] sm:$0xff]
    %v113 = vld [vmem:[#allocation5 + $0x190] sm:$0xff]
    %v114 = vld [vmem:[#allocation5 + $0x198] sm:$0xff]
    %v115 = vld [vmem:[#allocation5 + $0x1a0] sm:$0xff]
    %v116 = vld [vmem:[#allocation5 + $0x1a8] sm:$0xff]
    %v117 = vld [vmem:[#allocation5 + $0x1b0] sm:$0xff]
    %v118 = vld [vmem:[#allocation5 + $0x1b8] sm:$0xff]
    %v119 = vld [vmem:[#allocation5 + $0x1c0] sm:$0xff]
    %v120 = vld [vmem:[#allocation5 + $0x1c8] sm:$0xff]
    %v121 = vld [vmem:[#allocation5 + $0x1d0] sm:$0xff]
    %v122 = vld [vmem:[#allocation5 + $0x1d8] sm:$0xff]
    %v123 = vld [vmem:[#allocation5 + $0x1e0] sm:$0xff]
    %v124 = vld [vmem:[#allocation5 + $0x1e8] sm:$0xff]
    %v125 = vld [vmem:[#allocation5 + $0x1f0] sm:$0xff]
    %v126 = vld [vmem:[#allocation5 + $0x1f8] sm:$0xff]
    %v127 = vld [vmem:[#allocation2] sm:$0xff]
    %v128 = vld [vmem:[#allocation2 + $0x8] sm:$0xff]
    %v129 = vld [vmem:[#allocation2 + $0x10] sm:$0xff]
    %v130 = vld [vmem:[#allocation2 + $0x18] sm:$0xff]
    %131 = vmatprep.subr.mxu0 %v64
    %132 = vmatpush1.msra.mxu0 %v63
    %133 = vmatprep.subr.mxu0 %v68
    %134 = vmatpush1.msra.mxu0 %v67
    %135 = vmatprep.subr.mxu0 %v72
    %136 = vmatpush1.msra.mxu0 %v71
    %137 = vmatprep.subr.mxu0 %v76
    %138 = vmatpush1.msra.mxu0 %v75
    %139 = vmatprep.subr.mxu0 %v80
    %140 = vmatpush1.msra.mxu0 %v79
    %141 = vmatprep.subr.mxu0 %v84
    %142 = vmatpush1.msra.mxu0 %v83
    %143 = vmatprep.subr.mxu0 %v88
    %144 = vmatpush1.msra.mxu0 %v87
    %145 = vmatprep.subr.mxu0 %v92
    %146 = vmatpush1.msra.mxu0 %v91
    %147 = vmatprep.subr.mxu0 %v96
    %148 = vmatpush1.msra.mxu0 %v95
    %149 = vmatprep.subr.mxu0 %v100
    %150 = vmatpush1.msra.mxu0 %v99
    %151 = vmatprep.subr.mxu0 %v104
    %152 = vmatpush1.msra.mxu0 %v103
    %153 = vmatprep.subr.mxu0 %v108
    %154 = vmatpush1.msra.mxu0 %v107
    %155 = vmatprep.subr.mxu0 %v112
    %156 = vmatpush1.msra.mxu0 %v111
    %157 = vmatprep.subr.mxu0 %v116
    %158 = vmatpush1.msra.mxu0 %v115
    %159 = vmatprep.subr.mxu0 %v120
    %160 = vmatpush1.msra.mxu0 %v119
    %161 = vmatprep.subr.mxu0 %v124
    %162 = vmatpush1.msra.mxu0 %v123
    %163 = vmatprep.subr.mxu0 0.0
    %164 = vmatpush1.msra.mxu0 0.0
    %165 = vmatprep.subr.mxu0 0.0
    %166 = vmatpush1.msra.mxu0 0.0
    %167 = vmatprep.subr.mxu0 0.0
    %168 = vmatpush1.msra.mxu0 0.0
    %169 = vmatprep.subr.mxu0 0.0
    %170 = vmatpush1.msra.mxu0 0.0
    %171 = vmatprep.subr.mxu0 0.0
    %172 = vmatpush1.msra.mxu0 0.0
    %173 = vmatprep.subr.mxu0 0.0
    %174 = vmatpush1.msra.mxu0 0.0
    %175 = vmatprep.subr.mxu0 0.0
    %176 = vmatpush1.msra.mxu0 0.0
    %177 = vmatprep.subr.mxu0 0.0
    %178 = vmatpush1.msra.mxu0 0.0
    %179 = vmatprep.subr.mxu0 0.0
    %180 = vmatpush1.msra.mxu0 0.0
    %181 = vmatprep.subr.mxu0 0.0
    %182 = vmatpush1.msra.mxu0 0.0
    %183 = vmatprep.subr.mxu0 0.0
    %184 = vmatpush1.msra.mxu0 0.0
    %185 = vmatprep.subr.mxu0 0.0
    %186 = vmatpush1.msra.mxu0 0.0
    %187 = vmatprep.subr.mxu0 0.0
    %188 = vmatpush1.msra.mxu0 0.0
    %189 = vmatprep.subr.mxu0 0.0
    %190 = vmatpush1.msra.mxu0 0.0
    %191 = vmatprep.subr.mxu0 0.0
    %192 = vmatpush1.msra.mxu0 0.0
    %193 = vmatprep.subr.mxu0 0.0
    %194 = vmatpush1.msra.mxu0 0.0
    %195 = vmatprep.mubr.f32.mxu0 0.0
    %196 = vmatmul.mubr.f32.gmra.mrb[0].mxu0 %v61
    %v197 = vpop.f32.mrb[0].mxu0
    %v198 = vadd.f32 0.0, %v197
    %v199 = vpop.f32.mrb[0].mxu0
    %v200 = vadd.f32 0.0, %v199
    %201 = vdwg.mxu0
    %202 = vmatprep.subr.mxu0 %v66
    %203 = vmatpush1.msra.mxu0 %v65
    %204 = vmatprep.subr.mxu0 %v70
    %205 = vmatpush1.msra.mxu0 %v69
    %206 = vmatprep.subr.mxu0 %v74
    %207 = vmatpush1.msra.mxu0 %v73
    %208 = vmatprep.subr.mxu0 %v78
    %209 = vmatpush1.msra.mxu0 %v77
    %210 = vmatprep.subr.mxu0 %v82
    %211 = vmatpush1.msra.mxu0 %v81
    %212 = vmatprep.subr.mxu0 %v86
    %213 = vmatpush1.msra.mxu0 %v85
    %214 = vmatprep.subr.mxu0 %v90
    %215 = vmatpush1.msra.mxu0 %v89
    %216 = vmatprep.subr.mxu0 %v94
    %217 = vmatpush1.msra.mxu0 %v93
    %218 = vmatprep.subr.mxu0 %v98
    %219 = vmatpush1.msra.mxu0 %v97
    %220 = vmatprep.subr.mxu0 %v102
    %221 = vmatpush1.msra.mxu0 %v101
    %222 = vmatprep.subr.mxu0 %v106
    %223 = vmatpush1.msra.mxu0 %v105
    %224 = vmatprep.subr.mxu0 %v110
    %225 = vmatpush1.msra.mxu0 %v109
    %226 = vmatprep.subr.mxu0 %v114
    %227 = vmatpush1.msra.mxu0 %v113
    %228 = vmatprep.subr.mxu0 %v118
    %229 = vmatpush1.msra.mxu0 %v117
    %230 = vmatprep.subr.mxu0 %v122
    %231 = vmatpush1.msra.mxu0 %v121
    %232 = vmatprep.subr.mxu0 %v126
    %233 = vmatpush1.msra.mxu0 %v125
    %234 = vmatprep.subr.mxu0 0.0
    %235 = vmatpush1.msra.mxu0 0.0
    %236 = vmatprep.subr.mxu0 0.0
    %237 = vmatpush1.msra.mxu0 0.0
    %238 = vmatprep.subr.mxu0 0.0
    %239 = vmatpush1.msra.mxu0 0.0
    %240 = vmatprep.subr.mxu0 0.0
    %241 = vmatpush1.msra.mxu0 0.0
    %242 = vmatprep.subr.mxu0 0.0
    %243 = vmatpush1.msra.mxu0 0.0
    %244 = vmatprep.subr.mxu0 0.0
    %245 = vmatpush1.msra.mxu0 0.0
    %246 = vmatprep.subr.mxu0 0.0
    %247 = vmatpush1.msra.mxu0 0.0
    %248 = vmatprep.subr.mxu0 0.0
    %249 = vmatpush1.msra.mxu0 0.0
    %250 = vmatprep.subr.mxu0 0.0
    %251 = vmatpush1.msra.mxu0 0.0
    %252 = vmatprep.subr.mxu0 0.0
    %253 = vmatpush1.msra.mxu0 0.0
    %254 = vmatprep.subr.mxu0 0.0
    %255 = vmatpush1.msra.mxu0 0.0
    %256 = vmatprep.subr.mxu0 0.0
    %257 = vmatpush1.msra.mxu0 0.0
    %258 = vmatprep.subr.mxu0 0.0
    %259 = vmatpush1.msra.mxu0 0.0
    %260 = vmatprep.subr.mxu0 0.0
    %261 = vmatpush1.msra.mxu0 0.0
    %262 = vmatprep.subr.mxu0 0.0
    %263 = vmatpush1.msra.mxu0 0.0
    %264 = vmatprep.subr.mxu0 0.0
    %265 = vmatpush1.msra.mxu0 0.0
    %266 = vmatprep.mubr.f32.mxu0 0.0
    %267 = vmatmul.mubr.f32.gmra.mrb[0].mxu0 %v61
    %v268 = vpop.f32.mrb[0].mxu0
    %v269 = vadd.f32 0.0, %v268
    %v270 = vpop.f32.mrb[0].mxu0
    %v271 = vadd.f32 0.0, %v270
    %272 = vdwg.mxu0
    %v273 = vadd.f32 %v127, %v198
    %v274 = vadd.f32 %v128, %v200
    %v275 = vadd.f32 %v129, %v269
    %v276 = vadd.f32 %v130, %v271
    %v277 = vxor.u32 %v273, 2147483648
    %v278 = vmul.f32 %v277, 1.442695
    %v279 = vpow.pop %v278
    %v280 = vadd.f32 %v279, 1.0
    %v281 = vrcp.pop %v280
    %v282 = vmul.f32 1.0, %v281
    %v283 = vxor.u32 %v274, 2147483648
    %v284 = vmul.f32 %v283, 1.442695
    %v285 = vpow.pop %v284
    %v286 = vadd.f32 %v285, 1.0
    %v287 = vrcp.pop %v286
    %v288 = vmul.f32 1.0, %v287
    %v289 = vtanh.pop %v275
    %v290 = vxor.u32 %v276, 2147483648
    %v291 = vmul.f32 %v290, 1.442695
    %v292 = vpow.pop %v291
    %v293 = vadd.f32 %v292, 1.0
    %v294 = vrcp.pop %v293
    %v295 = vmul.f32 1.0, %v294
    %v296 = vmul.f32 %v288, %v62
    %v297 = vmul.f32 %v282, %v289
    %v298 = vadd.f32 %v296, %v297
    %v299 = vtanh.pop %v298
    %v300 = vmul.f32 %v295, %v299
    %v301 = vld [vmem:[%s1] sm:$0xff]
    %v302 = vsub.f32 %v300, %v61
    %304 = vset.pattern.permute.xlu0 0
    %305 = vperm.xlu0 %304, %v301
    %v306 = vpop.permute.xlu0 %305
    %v308 = vmul.f32 %v306, %v302
    %v309 = vadd.f32 %v61, %v308
    %v310 = vsub.f32 %v298, %v62
    %v311 = vmul.f32 %v306, %v310
    %v312 = vadd.f32 %v62, %v311
    %v313 = vmul.f32 %v306, %v300
    %314 = vst [vmem:[#allocation7] sm:$0xff] %v313
    %s315 = scalar_lea.vmem [#allocation2], 32
    %v316 = vld [vmem:[%s315] sm:$0xff]
    %v317 = vld [vmem:[%s315 + $0x8] sm:$0xff]
    %v318 = vld [vmem:[%s315 + $0x10] sm:$0xff]
    %v319 = vld [vmem:[%s315 + $0x18] sm:$0xff]
    %320 = vmatprep.subr.mxu0 %v64
    %321 = vmatpush1.msra.mxu0 %v63
    %322 = vmatprep.subr.mxu0 %v68
    %323 = vmatpush1.msra.mxu0 %v67
    %324 = vmatprep.subr.mxu0 %v72
    %325 = vmatpush1.msra.mxu0 %v71
    %326 = vmatprep.subr.mxu0 %v76
    %327 = vmatpush1.msra.mxu0 %v75
    %328 = vmatprep.subr.mxu0 %v80
    %329 = vmatpush1.msra.mxu0 %v79
    %330 = vmatprep.subr.mxu0 %v84
    %331 = vmatpush1.msra.mxu0 %v83
    %332 = vmatprep.subr.mxu0 %v88
    %333 = vmatpush1.msra.mxu0 %v87
    %334 = vmatprep.subr.mxu0 %v92
    %335 = vmatpush1.msra.mxu0 %v91
    %336 = vmatprep.subr.mxu0 %v96
    %337 = vmatpush1.msra.mxu0 %v95
    %338 = vmatprep.subr.mxu0 %v100
    %339 = vmatpush1.msra.mxu0 %v99
    %340 = vmatprep.subr.mxu0 %v104
    %341 = vmatpush1.msra.mxu0 %v103
    %342 = vmatprep.subr.mxu0 %v108
    %343 = vmatpush1.msra.mxu0 %v107
    %344 = vmatprep.subr.mxu0 %v112
    %345 = vmatpush1.msra.mxu0 %v111
    %346 = vmatprep.subr.mxu0 %v116
    %347 = vmatpush1.msra.mxu0 %v115
    %348 = vmatprep.subr.mxu0 %v120
    %349 = vmatpush1.msra.mxu0 %v119
    %350 = vmatprep.subr.mxu0 %v124
    %351 = vmatpush1.msra.mxu0 %v123
    %352 = vmatprep.subr.mxu0 0.0
    %353 = vmatpush1.msra.mxu0 0.0
    %354 = vmatprep.subr.mxu0 0.0
    %355 = vmatpush1.msra.mxu0 0.0
    %356 = vmatprep.subr.mxu0 0.0
    %357 = vmatpush1.msra.mxu0 0.0
    %358 = vmatprep.subr.mxu0 0.0
    %359 = vmatpush1.msra.mxu0 0.0
    %360 = vmatprep.subr.mxu0 0.0
    %361 = vmatpush1.msra.mxu0 0.0
    %362 = vmatprep.subr.mxu0 0.0
    %363 = vmatpush1.msra.mxu0 0.0
    %364 = vmatprep.subr.mxu0 0.0
    %365 = vmatpush1.msra.mxu0 0.0
    %366 = vmatprep.subr.mxu0 0.0
    %367 = vmatpush1.msra.mxu0 0.0
    %368 = vmatprep.subr.mxu0 0.0
    %369 = vmatpush1.msra.mxu0 0.0
    %370 = vmatprep.subr.mxu0 0.0
    %371 = vmatpush1.msra.mxu0 0.0
    %372 = vmatprep.subr.mxu0 0.0
    %373 = vmatpush1.msra.mxu0 0.0
    %374 = vmatprep.subr.mxu0 0.0
    %375 = vmatpush1.msra.mxu0 0.0
    %376 = vmatprep.subr.mxu0 0.0
    %377 = vmatpush1.msra.mxu0 0.0
    %378 = vmatprep.subr.mxu0 0.0
    %379 = vmatpush1.msra.mxu0 0.0
    %380 = vmatprep.subr.mxu0 0.0
    %381 = vmatpush1.msra.mxu0 0.0
    %382 = vmatprep.subr.mxu0 0.0
    %383 = vmatpush1.msra.mxu0 0.0
    %384 = vmatprep.mubr.f32.mxu0 0.0
    %385 = vmatmul.mubr.f32.gmra.mrb[0].mxu0 %v309
    %v386 = vpop.f32.mrb[0].mxu0
    %v387 = vadd.f32 0.0, %v386
    %v388 = vpop.f32.mrb[0].mxu0
    %v389 = vadd.f32 0.0, %v388
    %390 = vdwg.mxu0
    %391 = vmatprep.subr.mxu0 %v66
    %392 = vmatpush1.msra.mxu0 %v65
    %393 = vmatprep.subr.mxu0 %v70
    %394 = vmatpush1.msra.mxu0 %v69
    %395 = vmatprep.subr.mxu0 %v74
    %396 = vmatpush1.msra.mxu0 %v73
    %397 = vmatprep.subr.mxu0 %v78
    %398 = vmatpush1.msra.mxu0 %v77
    %399 = vmatprep.subr.mxu0 %v82
    %400 = vmatpush1.msra.mxu0 %v81
    %401 = vmatprep.subr.mxu0 %v86
    %402 = vmatpush1.msra.mxu0 %v85
    %403 = vmatprep.subr.mxu0 %v90
    %404 = vmatpush1.msra.mxu0 %v89
    %405 = vmatprep.subr.mxu0 %v94
    %406 = vmatpush1.msra.mxu0 %v93
    %407 = vmatprep.subr.mxu0 %v98
    %408 = vmatpush1.msra.mxu0 %v97
    %409 = vmatprep.subr.mxu0 %v102
    %410 = vmatpush1.msra.mxu0 %v101
    %411 = vmatprep.subr.mxu0 %v106
    %412 = vmatpush1.msra.mxu0 %v105
    %413 = vmatprep.subr.mxu0 %v110
    %414 = vmatpush1.msra.mxu0 %v109
    %415 = vmatprep.subr.mxu0 %v114
    %416 = vmatpush1.msra.mxu0 %v113
    %417 = vmatprep.subr.mxu0 %v118
    %418 = vmatpush1.msra.mxu0 %v117
    %419 = vmatprep.subr.mxu0 %v122
    %420 = vmatpush1.msra.mxu0 %v121
    %421 = vmatprep.subr.mxu0 %v126
    %422 = vmatpush1.msra.mxu0 %v125
    %423 = vmatprep.subr.mxu0 0.0
    %424 = vmatpush1.msra.mxu0 0.0
    %425 = vmatprep.subr.mxu0 0.0
    %426 = vmatpush1.msra.mxu0 0.0
    %427 = vmatprep.subr.mxu0 0.0
    %428 = vmatpush1.msra.mxu0 0.0
    %429 = vmatprep.subr.mxu0 0.0
    %430 = vmatpush1.msra.mxu0 0.0
    %431 = vmatprep.subr.mxu0 0.0
    %432 = vmatpush1.msra.mxu0 0.0
    %433 = vmatprep.subr.mxu0 0.0
    %434 = vmatpush1.msra.mxu0 0.0
    %435 = vmatprep.subr.mxu0 0.0
    %436 = vmatpush1.msra.mxu0 0.0
    %437 = vmatprep.subr.mxu0 0.0
    %438 = vmatpush1.msra.mxu0 0.0
    %439 = vmatprep.subr.mxu0 0.0
    %440 = vmatpush1.msra.mxu0 0.0
    %441 = vmatprep.subr.mxu0 0.0
    %442 = vmatpush1.msra.mxu0 0.0
    %443 = vmatprep.subr.mxu0 0.0
    %444 = vmatpush1.msra.mxu0 0.0
    %445 = vmatprep.subr.mxu0 0.0
    %446 = vmatpush1.msra.mxu0 0.0
    %447 = vmatprep.subr.mxu0 0.0
    %448 = vmatpush1.msra.mxu0 0.0
    %449 = vmatprep.subr.mxu0 0.0
    %450 = vmatpush1.msra.mxu0 0.0
    %451 = vmatprep.subr.mxu0 0.0
    %452 = vmatpush1.msra.mxu0 0.0
    %453 = vmatprep.subr.mxu0 0.0
    %454 = vmatpush1.msra.mxu0 0.0
    %455 = vmatprep.mubr.f32.mxu0 0.0
    %456 = vmatmul.mubr.f32.gmra.mrb[0].mxu0 %v309
    %v457 = vpop.f32.mrb[0].mxu0
    %v458 = vadd.f32 0.0, %v457
    %v459 = vpop.f32.mrb[0].mxu0
    %v460 = vadd.f32 0.0, %v459
    %461 = vdwg.mxu0
    %v462 = vadd.f32 %v316, %v387
    %v463 = vadd.f32 %v317, %v389
    %v464 = vadd.f32 %v318, %v458
    %v465 = vadd.f32 %v319, %v460
    %v466 = vxor.u32 %v462, 2147483648
    %v467 = vmul.f32 %v466, 1.442695
    %v468 = vpow.pop %v467
    %v469 = vadd.f32 %v468, 1.0
    %v470 = vrcp.pop %v469
    %v471 = vmul.f32 1.0, %v470
    %v472 = vxor.u32 %v463, 2147483648
    %v473 = vmul.f32 %v472, 1.442695
    %v474 = vpow.pop %v473
    %v475 = vadd.f32 %v474, 1.0
    %v476 = vrcp.pop %v475
    %v477 = vmul.f32 1.0, %v476
    %v478 = vtanh.pop %v464
    %v479 = vxor.u32 %v465, 2147483648
    %v480 = vmul.f32 %v479, 1.442695
    %v481 = vpow.pop %v480
    %v482 = vadd.f32 %v481, 1.0
    %v483 = vrcp.pop %v482
    %v484 = vmul.f32 1.0, %v483
    %v485 = vmul.f32 %v477, %v312
    %v486 = vmul.f32 %v471, %v478
    %v487 = vadd.f32 %v485, %v486
    %v488 = vtanh.pop %v487
    %v489 = vmul.f32 %v484, %v488
    %s490 = scalar_lea.vmem %s1, 8
    %v491 = vld [vmem:[%s490] sm:$0xff]
    %v492 = vsub.f32 %v489, %v309
    %494 = vset.pattern.permute.xlu0 0
    %495 = vperm.xlu0 %494, %v491
    %v496 = vpop.permute.xlu0 %495
    %v498 = vmul.f32 %v496, %v492
    %v499 = vadd.f32 %v309, %v498
    %v500 = vsub.f32 %v487, %v312
    %v501 = vmul.f32 %v496, %v500
    %v502 = vadd.f32 %v312, %v501
    %v503 = vmul.f32 %v496, %v489
    %s504 = scalar_lea.vmem [#allocation7], 8
    %505 = vst [vmem:[%s504] sm:$0xff] %v503
    %s506 = scalar_lea.vmem [#allocation2], 64
    %v507 = vld [vmem:[%s506] sm:$0xff]
    %v508 = vld [vmem:[%s506 + $0x8] sm:$0xff]
    %v509 = vld [vmem:[%s506 + $0x10] sm:$0xff]
    %v510 = vld [vmem:[%s506 + $0x18] sm:$0xff]
    %511 = vmatprep.subr.mxu0 %v64
    %512 = vmatpush1.msra.mxu0 %v63
    %513 = vmatprep.subr.mxu0 %v68
    %514 = vmatpush1.msra.mxu0 %v67
    %515 = vmatprep.subr.mxu0 %v72
    %516 = vmatpush1.msra.mxu0 %v71
    %517 = vmatprep.subr.mxu0 %v76
    %518 = vmatpush1.msra.mxu0 %v75
    %519 = vmatprep.subr.mxu0 %v80
    %520 = vmatpush1.msra.mxu0 %v79
    %521 = vmatprep.subr.mxu0 %v84
    %522 = vmatpush1.msra.mxu0 %v83
    %523 = vmatprep.subr.mxu0 %v88
    %524 = vmatpush1.msra.mxu0 %v87
    %525 = vmatprep.subr.mxu0 %v92
    %526 = vmatpush1.msra.mxu0 %v91
    %527 = vmatprep.subr.mxu0 %v96
    %528 = vmatpush1.msra.mxu0 %v95
    %529 = vmatprep.subr.mxu0 %v100
    %530 = vmatpush1.msra.mxu0 %v99
    %531 = vmatprep.subr.mxu0 %v104
    %532 = vmatpush1.msra.mxu0 %v103
    %533 = vmatprep.subr.mxu0 %v108
    %534 = vmatpush1.msra.mxu0 %v107
    %535 = vmatprep.subr.mxu0 %v112
    %536 = vmatpush1.msra.mxu0 %v111
    %537 = vmatprep.subr.mxu0 %v116
    %538 = vmatpush1.msra.mxu0 %v115
    %539 = vmatprep.subr.mxu0 %v120
    %540 = vmatpush1.msra.mxu0 %v119
    %541 = vmatprep.subr.mxu0 %v124
    %542 = vmatpush1.msra.mxu0 %v123
    %543 = vmatprep.subr.mxu0 0.0
    %544 = vmatpush1.msra.mxu0 0.0
    %545 = vmatprep.subr.mxu0 0.0
    %546 = vmatpush1.msra.mxu0 0.0
    %547 = vmatprep.subr.mxu0 0.0
    %548 = vmatpush1.msra.mxu0 0.0
    %549 = vmatprep.subr.mxu0 0.0
    %550 = vmatpush1.msra.mxu0 0.0
    %551 = vmatprep.subr.mxu0 0.0
    %552 = vmatpush1.msra.mxu0 0.0
    %553 = vmatprep.subr.mxu0 0.0
    %554 = vmatpush1.msra.mxu0 0.0
    %555 = vmatprep.subr.mxu0 0.0
    %556 = vmatpush1.msra.mxu0 0.0
    %557 = vmatprep.subr.mxu0 0.0
    %558 = vmatpush1.msra.mxu0 0.0
    %559 = vmatprep.subr.mxu0 0.0
    %560 = vmatpush1.msra.mxu0 0.0
    %561 = vmatprep.subr.mxu0 0.0
    %562 = vmatpush1.msra.mxu0 0.0
    %563 = vmatprep.subr.mxu0 0.0
    %564 = vmatpush1.msra.mxu0 0.0
    %565 = vmatprep.subr.mxu0 0.0
    %566 = vmatpush1.msra.mxu0 0.0
    %567 = vmatprep.subr.mxu0 0.0
    %568 = vmatpush1.msra.mxu0 0.0
    %569 = vmatprep.subr.mxu0 0.0
    %570 = vmatpush1.msra.mxu0 0.0
    %571 = vmatprep.subr.mxu0 0.0
    %572 = vmatpush1.msra.mxu0 0.0
    %573 = vmatprep.subr.mxu0 0.0
    %574 = vmatpush1.msra.mxu0 0.0
    %575 = vmatprep.mubr.f32.mxu0 0.0
    %576 = vmatmul.mubr.f32.gmra.mrb[0].mxu0 %v499
    %v577 = vpop.f32.mrb[0].mxu0
    %v578 = vadd.f32 0.0, %v577
    %v579 = vpop.f32.mrb[0].mxu0
    %v580 = vadd.f32 0.0, %v579
    %581 = vdwg.mxu0
    %582 = vmatprep.subr.mxu0 %v66
    %583 = vmatpush1.msra.mxu0 %v65
    %584 = vmatprep.subr.mxu0 %v70
    %585 = vmatpush1.msra.mxu0 %v69
    %586 = vmatprep.subr.mxu0 %v74
    %587 = vmatpush1.msra.mxu0 %v73
    %588 = vmatprep.subr.mxu0 %v78
    %589 = vmatpush1.msra.mxu0 %v77
    %590 = vmatprep.subr.mxu0 %v82
    %591 = vmatpush1.msra.mxu0 %v81
    %592 = vmatprep.subr.mxu0 %v86
    %593 = vmatpush1.msra.mxu0 %v85
    %594 = vmatprep.subr.mxu0 %v90
    %595 = vmatpush1.msra.mxu0 %v89
    %596 = vmatprep.subr.mxu0 %v94
    %597 = vmatpush1.msra.mxu0 %v93
    %598 = vmatprep.subr.mxu0 %v98
    %599 = vmatpush1.msra.mxu0 %v97
    %600 = vmatprep.subr.mxu0 %v102
    %601 = vmatpush1.msra.mxu0 %v101
    %602 = vmatprep.subr.mxu0 %v106
    %603 = vmatpush1.msra.mxu0 %v105
    %604 = vmatprep.subr.mxu0 %v110
    %605 = vmatpush1.msra.mxu0 %v109
    %606 = vmatprep.subr.mxu0 %v114
    %607 = vmatpush1.msra.mxu0 %v113
    %608 = vmatprep.subr.mxu0 %v118
    %609 = vmatpush1.msra.mxu0 %v117
    %610 = vmatprep.subr.mxu0 %v122
    %611 = vmatpush1.msra.mxu0 %v121
    %612 = vmatprep.subr.mxu0 %v126
    %613 = vmatpush1.msra.mxu0 %v125
    %614 = vmatprep.subr.mxu0 0.0
    %615 = vmatpush1.msra.mxu0 0.0
    %616 = vmatprep.subr.mxu0 0.0
    %617 = vmatpush1.msra.mxu0 0.0
    %618 = vmatprep.subr.mxu0 0.0
    %619 = vmatpush1.msra.mxu0 0.0
    %620 = vmatprep.subr.mxu0 0.0
    %621 = vmatpush1.msra.mxu0 0.0
    %622 = vmatprep.subr.mxu0 0.0
    %623 = vmatpush1.msra.mxu0 0.0
    %624 = vmatprep.subr.mxu0 0.0
    %625 = vmatpush1.msra.mxu0 0.0
    %626 = vmatprep.subr.mxu0 0.0
    %627 = vmatpush1.msra.mxu0 0.0
    %628 = vmatprep.subr.mxu0 0.0
    %629 = vmatpush1.msra.mxu0 0.0
    %630 = vmatprep.subr.mxu0 0.0
    %631 = vmatpush1.msra.mxu0 0.0
    %632 = vmatprep.subr.mxu0 0.0
    %633 = vmatpush1.msra.mxu0 0.0
    %634 = vmatprep.subr.mxu0 0.0
    %635 = vmatpush1.msra.mxu0 0.0
    %636 = vmatprep.subr.mxu0 0.0
    %637 = vmatpush1.msra.mxu0 0.0
    %638 = vmatprep.subr.mxu0 0.0
    %639 = vmatpush1.msra.mxu0 0.0
    %640 = vmatprep.subr.mxu0 0.0
    %641 = vmatpush1.msra.mxu0 0.0
    %642 = vmatprep.subr.mxu0 0.0
    %643 = vmatpush1.msra.mxu0 0.0
    %644 = vmatprep.subr.mxu0 0.0
    %645 = vmatpush1.msra.mxu0 0.0
    %646 = vmatprep.mubr.f32.mxu0 0.0
    %647 = vmatmul.mubr.f32.gmra.mrb[0].mxu0 %v499
    %v648 = vpop.f32.mrb[0].mxu0
    %v649 = vadd.f32 0.0, %v648
    %v650 = vpop.f32.mrb[0].mxu0
    %v651 = vadd.f32 0.0, %v650
    %652 = vdwg.mxu0
    %v653 = vadd.f32 %v507, %v578
    %v654 = vadd.f32 %v508, %v580
    %v655 = vadd.f32 %v509, %v649
    %v656 = vadd.f32 %v510, %v651
    %v657 = vxor.u32 %v653, 2147483648
    %v658 = vmul.f32 %v657, 1.442695
    %v659 = vpow.pop %v658
    %v660 = vadd.f32 %v659, 1.0
    %v661 = vrcp.pop %v660
    %v662 = vmul.f32 1.0, %v661
    %v663 = vxor.u32 %v654, 2147483648
    %v664 = vmul.f32 %v663, 1.442695
    %v665 = vpow.pop %v664
    %v666 = vadd.f32 %v665, 1.0
    %v667 = vrcp.pop %v666
    %v668 = vmul.f32 1.0, %v667
    %v669 = vtanh.pop %v655
    %v670 = vxor.u32 %v656, 2147483648
    %v671 = vmul.f32 %v670, 1.442695
    %v672 = vpow.pop %v671
    %v673 = vadd.f32 %v672, 1.0
    %v674 = vrcp.pop %v673
    %v675 = vmul.f32 1.0, %v674
    %v676 = vmul.f32 %v668, %v502
    %v677 = vmul.f32 %v662, %v669
    %v678 = vadd.f32 %v676, %v677
    %v679 = vtanh.pop %v678
    %v680 = vmul.f32 %v675, %v679
    %s681 = scalar_lea.vmem %s1, 16
    %v682 = vld [vmem:[%s681] sm:$0xff]
    %v683 = vsub.f32 %v680, %v499
    %685 = vset.pattern.permute.xlu0 0
    %686 = vperm.xlu0 %685, %v682
    %v687 = vpop.permute.xlu0 %686
    %v689 = vmul.f32 %v687, %v683
    %v690 = vadd.f32 %v499, %v689
    %v691 = vsub.f32 %v678, %v502
    %v692 = vmul.f32 %v687, %v691
    %v693 = vadd.f32 %v502, %v692
    %v694 = vmul.f32 %v687, %v680
    %s695 = scalar_lea.vmem [#allocation7], 16
    %696 = vst [vmem:[%s695] sm:$0xff] %v694
    %s697 = scalar_lea.vmem [#allocation2], 96
    %v698 = vld [vmem:[%s697] sm:$0xff]
    %v699 = vld [vmem:[%s697 + $0x8] sm:$0xff]
    %v700 = vld [vmem:[%s697 + $0x10] sm:$0xff]
    %v701 = vld [vmem:[%s697 + $0x18] sm:$0xff]
    %702 = vmatprep.subr.mxu0 %v64
    %703 = vmatpush1.msra.mxu0 %v63
    %704 = vmatprep.subr.mxu0 %v68
    %705 = vmatpush1.msra.mxu0 %v67
    %706 = vmatprep.subr.mxu0 %v72
    %707 = vmatpush1.msra.mxu0 %v71
    %708 = vmatprep.subr.mxu0 %v76
    %709 = vmatpush1.msra.mxu0 %v75
    %710 = vmatprep.subr.mxu0 %v80
    %711 = vmatpush1.msra.mxu0 %v79
    %712 = vmatprep.subr.mxu0 %v84
    %713 = vmatpush1.msra.mxu0 %v83
    %714 = vmatprep.subr.mxu0 %v88
    %715 = vmatpush1.msra.mxu0 %v87
    %716 = vmatprep.subr.mxu0 %v92
    %717 = vmatpush1.msra.mxu0 %v91
    %718 = vmatprep.subr.mxu0 %v96
    %719 = vmatpush1.msra.mxu0 %v95
    %720 = vmatprep.subr.mxu0 %v100
    %721 = vmatpush1.msra.mxu0 %v99
    %722 = vmatprep.subr.mxu0 %v104
    %723 = vmatpush1.msra.mxu0 %v103
    %724 = vmatprep.subr.mxu0 %v108
    %725 = vmatpush1.msra.mxu0 %v107
    %726 = vmatprep.subr.mxu0 %v112
    %727 = vmatpush1.msra.mxu0 %v111
    %728 = vmatprep.subr.mxu0 %v116
    %729 = vmatpush1.msra.mxu0 %v115
    %730 = vmatprep.subr.mxu0 %v120
    %731 = vmatpush1.msra.mxu0 %v119
    %732 = vmatprep.subr.mxu0 %v124
    %733 = vmatpush1.msra.mxu0 %v123
    %734 = vmatprep.subr.mxu0 0.0
    %735 = vmatpush1.msra.mxu0 0.0
    %736 = vmatprep.subr.mxu0 0.0
    %737 = vmatpush1.msra.mxu0 0.0
    %738 = vmatprep.subr.mxu0 0.0
    %739 = vmatpush1.msra.mxu0 0.0
    %740 = vmatprep.subr.mxu0 0.0
    %741 = vmatpush1.msra.mxu0 0.0
    %742 = vmatprep.subr.mxu0 0.0
    %743 = vmatpush1.msra.mxu0 0.0
    %744 = vmatprep.subr.mxu0 0.0
    %745 = vmatpush1.msra.mxu0 0.0
    %746 = vmatprep.subr.mxu0 0.0
    %747 = vmatpush1.msra.mxu0 0.0
    %748 = vmatprep.subr.mxu0 0.0
    %749 = vmatpush1.msra.mxu0 0.0
    %750 = vmatprep.subr.mxu0 0.0
    %751 = vmatpush1.msra.mxu0 0.0
    %752 = vmatprep.subr.mxu0 0.0
    %753 = vmatpush1.msra.mxu0 0.0
    %754 = vmatprep.subr.mxu0 0.0
    %755 = vmatpush1.msra.mxu0 0.0
    %756 = vmatprep.subr.mxu0 0.0
    %757 = vmatpush1.msra.mxu0 0.0
    %758 = vmatprep.subr.mxu0 0.0
    %759 = vmatpush1.msra.mxu0 0.0
    %760 = vmatprep.subr.mxu0 0.0
    %761 = vmatpush1.msra.mxu0 0.0
    %762 = vmatprep.subr.mxu0 0.0
    %763 = vmatpush1.msra.mxu0 0.0
    %764 = vmatprep.subr.mxu0 0.0
    %765 = vmatpush1.msra.mxu0 0.0
    %766 = vmatprep.mubr.f32.mxu0 0.0
    %767 = vmatmul.mubr.f32.gmra.mrb[0].mxu0 %v690
    %v768 = vpop.f32.mrb[0].mxu0
    %v769 = vadd.f32 0.0, %v768
    %v770 = vpop.f32.mrb[0].mxu0
    %v771 = vadd.f32 0.0, %v770
    %772 = vdwg.mxu0
    %773 = vmatprep.subr.mxu0 %v66
    %774 = vmatpush1.msra.mxu0 %v65
    %775 = vmatprep.subr.mxu0 %v70
    %776 = vmatpush1.msra.mxu0 %v69
    %777 = vmatprep.subr.mxu0 %v74
    %778 = vmatpush1.msra.mxu0 %v73
    %779 = vmatprep.subr.mxu0 %v78
    %780 = vmatpush1.msra.mxu0 %v77
    %781 = vmatprep.subr.mxu0 %v82
    %782 = vmatpush1.msra.mxu0 %v81
    %783 = vmatprep.subr.mxu0 %v86
    %784 = vmatpush1.msra.mxu0 %v85
    %785 = vmatprep.subr.mxu0 %v90
    %786 = vmatpush1.msra.mxu0 %v89
    %787 = vmatprep.subr.mxu0 %v94
    %788 = vmatpush1.msra.mxu0 %v93
    %789 = vmatprep.subr.mxu0 %v98
    %790 = vmatpush1.msra.mxu0 %v97
    %791 = vmatprep.subr.mxu0 %v102
    %792 = vmatpush1.msra.mxu0 %v101
    %793 = vmatprep.subr.mxu0 %v106
    %794 = vmatpush1.msra.mxu0 %v105
    %795 = vmatprep.subr.mxu0 %v110
    %796 = vmatpush1.msra.mxu0 %v109
    %797 = vmatprep.subr.mxu0 %v114
    %798 = vmatpush1.msra.mxu0 %v113
    %799 = vmatprep.subr.mxu0 %v118
    %800 = vmatpush1.msra.mxu0 %v117
    %801 = vmatprep.subr.mxu0 %v122
    %802 = vmatpush1.msra.mxu0 %v121
    %803 = vmatprep.subr.mxu0 %v126
    %804 = vmatpush1.msra.mxu0 %v125
    %805 = vmatprep.subr.mxu0 0.0
    %806 = vmatpush1.msra.mxu0 0.0
    %807 = vmatprep.subr.mxu0 0.0
    %808 = vmatpush1.msra.mxu0 0.0
    %809 = vmatprep.subr.mxu0 0.0
    %810 = vmatpush1.msra.mxu0 0.0
    %811 = vmatprep.subr.mxu0 0.0
    %812 = vmatpush1.msra.mxu0 0.0
    %813 = vmatprep.subr.mxu0 0.0
    %814 = vmatpush1.msra.mxu0 0.0
    %815 = vmatprep.subr.mxu0 0.0
    %816 = vmatpush1.msra.mxu0 0.0
    %817 = vmatprep.subr.mxu0 0.0
    %818 = vmatpush1.msra.mxu0 0.0
    %819 = vmatprep.subr.mxu0 0.0
    %820 = vmatpush1.msra.mxu0 0.0
    %821 = vmatprep.subr.mxu0 0.0
    %822 = vmatpush1.msra.mxu0 0.0
    %823 = vmatprep.subr.mxu0 0.0
    %824 = vmatpush1.msra.mxu0 0.0
    %825 = vmatprep.subr.mxu0 0.0
    %826 = vmatpush1.msra.mxu0 0.0
    %827 = vmatprep.subr.mxu0 0.0
    %828 = vmatpush1.msra.mxu0 0.0
    %829 = vmatprep.subr.mxu0 0.0
    %830 = vmatpush1.msra.mxu0 0.0
    %831 = vmatprep.subr.mxu0 0.0
    %832 = vmatpush1.msra.mxu0 0.0
    %833 = vmatprep.subr.mxu0 0.0
    %834 = vmatpush1.msra.mxu0 0.0
    %835 = vmatprep.subr.mxu0 0.0
    %836 = vmatpush1.msra.mxu0 0.0
    %837 = vmatprep.mubr.f32.mxu0 0.0
    %838 = vmatmul.mubr.f32.gmra.mrb[0].mxu0 %v690
    %v839 = vpop.f32.mrb[0].mxu0
    %v840 = vadd.f32 0.0, %v839
    %v841 = vpop.f32.mrb[0].mxu0
    %v842 = vadd.f32 0.0, %v841
    %843 = vdwg.mxu0
    %v844 = vadd.f32 %v698, %v769
    %v845 = vadd.f32 %v699, %v771
    %v846 = vadd.f32 %v700, %v840
    %v847 = vadd.f32 %v701, %v842
    %v848 = vxor.u32 %v844, 2147483648
    %v849 = vmul.f32 %v848, 1.442695
    %v850 = vpow.pop %v849
    %v851 = vadd.f32 %v850, 1.0
    %v852 = vrcp.pop %v851
    %v853 = vmul.f32 1.0, %v852
    %v854 = vxor.u32 %v845, 2147483648
    %v855 = vmul.f32 %v854, 1.442695
    %v856 = vpow.pop %v855
    %v857 = vadd.f32 %v856, 1.0
    %v858 = vrcp.pop %v857
    %v859 = vmul.f32 1.0, %v858
    %v860 = vtanh.pop %v846
    %v861 = vxor.u32 %v847, 2147483648
    %v862 = vmul.f32 %v861, 1.442695
    %v863 = vpow.pop %v862
    %v864 = vadd.f32 %v863, 1.0
    %v865 = vrcp.pop %v864
    %v866 = vmul.f32 1.0, %v865
    %v867 = vmul.f32 %v859, %v693
    %v868 = vmul.f32 %v853, %v860
    %v869 = vadd.f32 %v867, %v868
    %v870 = vtanh.pop %v869
    %v871 = vmul.f32 %v866, %v870
    %s872 = scalar_lea.vmem %s1, 24
    %v873 = vld [vmem:[%s872] sm:$0xff]
    %v874 = vsub.f32 %v871, %v690
    %876 = vset.pattern.permute.xlu0 0
    %877 = vperm.xlu0 %876, %v873
    %v878 = vpop.permute.xlu0 %877
    %v880 = vmul.f32 %v878, %v874
    %v881 = vadd.f32 %v690, %v880
    %v882 = vsub.f32 %v869, %v693
    %v883 = vmul.f32 %v878, %v882
    %v884 = vadd.f32 %v693, %v883
    %v885 = vmul.f32 %v878, %v871
    %s886 = scalar_lea.vmem [#allocation7], 24
    %887 = vst [vmem:[%s886] sm:$0xff] %v885
    %s888 = scalar_lea.vmem [#allocation2], 128
    %v889 = vld [vmem:[%s888] sm:$0xff]
    %v890 = vld [vmem:[%s888 + $0x8] sm:$0xff]
    %v891 = vld [vmem:[%s888 + $0x10] sm:$0xff]
    %v892 = vld [vmem:[%s888 + $0x18] sm:$0xff]
    %893 = vmatprep.subr.mxu0 %v64
    %894 = vmatpush1.msra.mxu0 %v63
    %895 = vmatprep.subr.mxu0 %v68
    %896 = vmatpush1.msra.mxu0 %v67
    %897 = vmatprep.subr.mxu0 %v72
    %898 = vmatpush1.msra.mxu0 %v71
    %899 = vmatprep.subr.mxu0 %v76
    %900 = vmatpush1.msra.mxu0 %v75
    %901 = vmatprep.subr.mxu0 %v80
    %902 = vmatpush1.msra.mxu0 %v79
    %903 = vmatprep.subr.mxu0 %v84
    %904 = vmatpush1.msra.mxu0 %v83
    %905 = vmatprep.subr.mxu0 %v88
    %906 = vmatpush1.msra.mxu0 %v87
    %907 = vmatprep.subr.mxu0 %v92
    %908 = vmatpush1.msra.mxu0 %v91
    %909 = vmatprep.subr.mxu0 %v96
    %910 = vmatpush1.msra.mxu0 %v95
    %911 = vmatprep.subr.mxu0 %v100
    %912 = vmatpush1.msra.mxu0 %v99
    %913 = vmatprep.subr.mxu0 %v104
    %914 = vmatpush1.msra.mxu0 %v103
    %915 = vmatprep.subr.mxu0 %v108
    %916 = vmatpush1.msra.mxu0 %v107
    %917 = vmatprep.subr.mxu0 %v112
    %918 = vmatpush1.msra.mxu0 %v111
    %919 = vmatprep.subr.mxu0 %v116
    %920 = vmatpush1.msra.mxu0 %v115
    %921 = vmatprep.subr.mxu0 %v120
    %922 = vmatpush1.msra.mxu0 %v119
    %923 = vmatprep.subr.mxu0 %v124
    %924 = vmatpush1.msra.mxu0 %v123
    %925 = vmatprep.subr.mxu0 0.0
    %926 = vmatpush1.msra.mxu0 0.0
    %927 = vmatprep.subr.mxu0 0.0
    %928 = vmatpush1.msra.mxu0 0.0
    %929 = vmatprep.subr.mxu0 0.0
    %930 = vmatpush1.msra.mxu0 0.0
    %931 = vmatprep.subr.mxu0 0.0
    %932 = vmatpush1.msra.mxu0 0.0
    %933 = vmatprep.subr.mxu0 0.0
    %934 = vmatpush1.msra.mxu0 0.0
    %935 = vmatprep.subr.mxu0 0.0
    %936 = vmatpush1.msra.mxu0 0.0
    %937 = vmatprep.subr.mxu0 0.0
    %938 = vmatpush1.msra.mxu0 0.0
    %939 = vmatprep.subr.mxu0 0.0
    %940 = vmatpush1.msra.mxu0 0.0
    %941 = vmatprep.subr.mxu0 0.0
    %942 = vmatpush1.msra.mxu0 0.0
    %943 = vmatprep.subr.mxu0 0.0
    %944 = vmatpush1.msra.mxu0 0.0
    %945 = vmatprep.subr.mxu0 0.0
    %946 = vmatpush1.msra.mxu0 0.0
    %947 = vmatprep.subr.mxu0 0.0
    %948 = vmatpush1.msra.mxu0 0.0
    %949 = vmatprep.subr.mxu0 0.0
    %950 = vmatpush1.msra.mxu0 0.0
    %951 = vmatprep.subr.mxu0 0.0
    %952 = vmatpush1.msra.mxu0 0.0
    %953 = vmatprep.subr.mxu0 0.0
    %954 = vmatpush1.msra.mxu0 0.0
    %955 = vmatprep.subr.mxu0 0.0
    %956 = vmatpush1.msra.mxu0 0.0
    %957 = vmatprep.mubr.f32.mxu0 0.0
    %958 = vmatmul.mubr.f32.gmra.mrb[0].mxu0 %v881
    %v959 = vpop.f32.mrb[0].mxu0
    %v960 = vadd.f32 0.0, %v959
    %v961 = vpop.f32.mrb[0].mxu0
    %v962 = vadd.f32 0.0, %v961
    %963 = vdwg.mxu0
    %964 = vmatprep.subr.mxu0 %v66
    %965 = vmatpush1.msra.mxu0 %v65
    %966 = vmatprep.subr.mxu0 %v70
    %967 = vmatpush1.msra.mxu0 %v69
    %968 = vmatprep.subr.mxu0 %v74
    %969 = vmatpush1.msra.mxu0 %v73
    %970 = vmatprep.subr.mxu0 %v78
    %971 = vmatpush1.msra.mxu0 %v77
    %972 = vmatprep.subr.mxu0 %v82
    %973 = vmatpush1.msra.mxu0 %v81
    %974 = vmatprep.subr.mxu0 %v86
    %975 = vmatpush1.msra.mxu0 %v85
    %976 = vmatprep.subr.mxu0 %v90
    %977 = vmatpush1.msra.mxu0 %v89
    %978 = vmatprep.subr.mxu0 %v94
    %979 = vmatpush1.msra.mxu0 %v93
    %980 = vmatprep.subr.mxu0 %v98
    %981 = vmatpush1.msra.mxu0 %v97
    %982 = vmatprep.subr.mxu0 %v102
    %983 = vmatpush1.msra.mxu0 %v101
    %984 = vmatprep.subr.mxu0 %v106
    %985 = vmatpush1.msra.mxu0 %v105
    %986 = vmatprep.subr.mxu0 %v110
    %987 = vmatpush1.msra.mxu0 %v109
    %988 = vmatprep.subr.mxu0 %v114
    %989 = vmatpush1.msra.mxu0 %v113
    %990 = vmatprep.subr.mxu0 %v118
    %991 = vmatpush1.msra.mxu0 %v117
    %992 = vmatprep.subr.mxu0 %v122
    %993 = vmatpush1.msra.mxu0 %v121
    %994 = vmatprep.subr.mxu0 %v126
    %995 = vmatpush1.msra.mxu0 %v125
    %996 = vmatprep.subr.mxu0 0.0
    %997 = vmatpush1.msra.mxu0 0.0
    %998 = vmatprep.subr.mxu0 0.0
    %999 = vmatpush1.msra.mxu0 0.0
    %1000 = vmatprep.subr.mxu0 0.0
    %1001 = vmatpush1.msra.mxu0 0.0
    %1002 = vmatprep.subr.mxu0 0.0
    %1003 = vmatpush1.msra.mxu0 0.0
    %1004 = vmatprep.subr.mxu0 0.0
    %1005 = vmatpush1.msra.mxu0 0.0
    %1006 = vmatprep.subr.mxu0 0.0
    %1007 = vmatpush1.msra.mxu0 0.0
    %1008 = vmatprep.subr.mxu0 0.0
    %1009 = vmatpush1.msra.mxu0 0.0
    %1010 = vmatprep.subr.mxu0 0.0
    %1011 = vmatpush1.msra.mxu0 0.0
    %1012 = vmatprep.subr.mxu0 0.0
    %1013 = vmatpush1.msra.mxu0 0.0
    %1014 = vmatprep.subr.mxu0 0.0
    %1015 = vmatpush1.msra.mxu0 0.0
    %1016 = vmatprep.subr.mxu0 0.0
    %1017 = vmatpush1.msra.mxu0 0.0
    %1018 = vmatprep.subr.mxu0 0.0
    %1019 = vmatpush1.msra.mxu0 0.0
    %1020 = vmatprep.subr.mxu0 0.0
    %1021 = vmatpush1.msra.mxu0 0.0
    %1022 = vmatprep.subr.mxu0 0.0
    %1023 = vmatpush1.msra.mxu0 0.0
    %1024 = vmatprep.subr.mxu0 0.0
    %1025 = vmatpush1.msra.mxu0 0.0
    %1026 = vmatprep.subr.mxu0 0.0
    %1027 = vmatpush1.msra.mxu0 0.0
    %1028 = vmatprep.mubr.f32.mxu0 0.0
    %1029 = vmatmul.mubr.f32.gmra.mrb[0].mxu0 %v881
    %v1030 = vpop.f32.mrb[0].mxu0
    %v1031 = vadd.f32 0.0, %v1030
    %v1032 = vpop.f32.mrb[0].mxu0
    %v1033 = vadd.f32 0.0, %v1032
    %1034 = vdwg.mxu0
    %v1035 = vadd.f32 %v889, %v960
    %v1036 = vadd.f32 %v890, %v962
    %v1037 = vadd.f32 %v891, %v1031
    %v1038 = vadd.f32 %v892, %v1033
    %v1039 = vxor.u32 %v1035, 2147483648
    %v1040 = vmul.f32 %v1039, 1.442695
    %v1041 = vpow.pop %v1040
    %v1042 = vadd.f32 %v1041, 1.0
    %v1043 = vrcp.pop %v1042
    %v1044 = vmul.f32 1.0, %v1043
    %v1045 = vxor.u32 %v1036, 2147483648
    %v1046 = vmul.f32 %v1045, 1.442695
    %v1047 = vpow.pop %v1046
    %v1048 = vadd.f32 %v1047, 1.0
    %v1049 = vrcp.pop %v1048
    %v1050 = vmul.f32 1.0, %v1049
    %v1051 = vtanh.pop %v1037
    %v1052 = vxor.u32 %v1038, 2147483648
    %v1053 = vmul.f32 %v1052, 1.442695
    %v1054 = vpow.pop %v1053
    %v1055 = vadd.f32 %v1054, 1.0
    %v1056 = vrcp.pop %v1055
    %v1057 = vmul.f32 1.0, %v1056
    %v1058 = vmul.f32 %v1050, %v884
    %v1059 = vmul.f32 %v1044, %v1051
    %v1060 = vadd.f32 %v1058, %v1059
    %v1061 = vtanh.pop %v1060
    %v1062 = vmul.f32 %v1057, %v1061
    %s1063 = scalar_lea.vmem %s1, 32
    %v1064 = vld [vmem:[%s1063] sm:$0xff]
    %v1065 = vsub.f32 %v1062, %v881
    %1067 = vset.pattern.permute.xlu0 0
    %1068 = vperm.xlu0 %1067, %v1064
    %v1069 = vpop.permute.xlu0 %1068
    %v1071 = vmul.f32 %v1069, %v1065
    %v1072 = vadd.f32 %v881, %v1071
    %v1073 = vsub.f32 %v1060, %v884
    %v1074 = vmul.f32 %v1069, %v1073
    %v1075 = vadd.f32 %v884, %v1074
    %v1076 = vmul.f32 %v1069, %v1062
    %s1077 = scalar_lea.vmem [#allocation7], 32
    %1078 = vst [vmem:[%s1077] sm:$0xff] %v1076
    %s1079 = scalar_lea.vmem [#allocation2], 160
    %v1080 = vld [vmem:[%s1079] sm:$0xff]
    %v1081 = vld [vmem:[%s1079 + $0x8] sm:$0xff]
    %v1082 = vld [vmem:[%s1079 + $0x10] sm:$0xff]
    %v1083 = vld [vmem:[%s1079 + $0x18] sm:$0xff]
    %1084 = vmatprep.subr.mxu0 %v64
    %1085 = vmatpush1.msra.mxu0 %v63
    %1086 = vmatprep.subr.mxu0 %v68
    %1087 = vmatpush1.msra.mxu0 %v67
    %1088 = vmatprep.subr.mxu0 %v72
    %1089 = vmatpush1.msra.mxu0 %v71
    %1090 = vmatprep.subr.mxu0 %v76
    %1091 = vmatpush1.msra.mxu0 %v75
    %1092 = vmatprep.subr.mxu0 %v80
    %1093 = vmatpush1.msra.mxu0 %v79
    %1094 = vmatprep.subr.mxu0 %v84
    %1095 = vmatpush1.msra.mxu0 %v83
    %1096 = vmatprep.subr.mxu0 %v88
    %1097 = vmatpush1.msra.mxu0 %v87
    %1098 = vmatprep.subr.mxu0 %v92
    %1099 = vmatpush1.msra.mxu0 %v91
    %1100 = vmatprep.subr.mxu0 %v96
    %1101 = vmatpush1.msra.mxu0 %v95
    %1102 = vmatprep.subr.mxu0 %v100
    %1103 = vmatpush1.msra.mxu0 %v99
    %1104 = vmatprep.subr.mxu0 %v104
    %1105 = vmatpush1.msra.mxu0 %v103
    %1106 = vmatprep.subr.mxu0 %v108
    %1107 = vmatpush1.msra.mxu0 %v107
    %1108 = vmatprep.subr.mxu0 %v112
    %1109 = vmatpush1.msra.mxu0 %v111
    %1110 = vmatprep.subr.mxu0 %v116
    %1111 = vmatpush1.msra.mxu0 %v115
    %1112 = vmatprep.subr.mxu0 %v120
    %1113 = vmatpush1.msra.mxu0 %v119
    %1114 = vmatprep.subr.mxu0 %v124
    %1115 = vmatpush1.msra.mxu0 %v123
    %1116 = vmatprep.subr.mxu0 0.0
    %1117 = vmatpush1.msra.mxu0 0.0
    %1118 = vmatprep.subr.mxu0 0.0
    %1119 = vmatpush1.msra.mxu0 0.0
    %1120 = vmatprep.subr.mxu0 0.0
    %1121 = vmatpush1.msra.mxu0 0.0
    %1122 = vmatprep.subr.mxu0 0.0
    %1123 = vmatpush1.msra.mxu0 0.0
    %1124 = vmatprep.subr.mxu0 0.0
    %1125 = vmatpush1.msra.mxu0 0.0
    %1126 = vmatprep.subr.mxu0 0.0
    %1127 = vmatpush1.msra.mxu0 0.0
    %1128 = vmatprep.subr.mxu0 0.0
    %1129 = vmatpush1.msra.mxu0 0.0
    %1130 = vmatprep.subr.mxu0 0.0
    %1131 = vmatpush1.msra.mxu0 0.0
    %1132 = vmatprep.subr.mxu0 0.0
    %1133 = vmatpush1.msra.mxu0 0.0
    %1134 = vmatprep.subr.mxu0 0.0
    %1135 = vmatpush1.msra.mxu0 0.0
    %1136 = vmatprep.subr.mxu0 0.0
    %1137 = vmatpush1.msra.mxu0 0.0
    %1138 = vmatprep.subr.mxu0 0.0
    %1139 = vmatpush1.msra.mxu0 0.0
    %1140 = vmatprep.subr.mxu0 0.0
    %1141 = vmatpush1.msra.mxu0 0.0
    %1142 = vmatprep.subr.mxu0 0.0
    %1143 = vmatpush1.msra.mxu0 0.0
    %1144 = vmatprep.subr.mxu0 0.0
    %1145 = vmatpush1.msra.mxu0 0.0
    %1146 = vmatprep.subr.mxu0 0.0
    %1147 = vmatpush1.msra.mxu0 0.0
    %1148 = vmatprep.mubr.f32.mxu0 0.0
    %1149 = vmatmul.mubr.f32.gmra.mrb[0].mxu0 %v1072
    %v1150 = vpop.f32.mrb[0].mxu0
    %v1151 = vadd.f32 0.0, %v1150
    %v1152 = vpop.f32.mrb[0].mxu0
    %v1153 = vadd.f32 0.0, %v1152
    %1154 = vdwg.mxu0
    %1155 = vmatprep.subr.mxu0 %v66
    %1156 = vmatpush1.msra.mxu0 %v65
    %1157 = vmatprep.subr.mxu0 %v70
    %1158 = vmatpush1.msra.mxu0 %v69
    %1159 = vmatprep.subr.mxu0 %v74
    %1160 = vmatpush1.msra.mxu0 %v73
    %1161 = vmatprep.subr.mxu0 %v78
    %1162 = vmatpush1.msra.mxu0 %v77
    %1163 = vmatprep.subr.mxu0 %v82
    %1164 = vmatpush1.msra.mxu0 %v81
    %1165 = vmatprep.subr.mxu0 %v86
    %1166 = vmatpush1.msra.mxu0 %v85
    %1167 = vmatprep.subr.mxu0 %v90
    %1168 = vmatpush1.msra.mxu0 %v89
    %1169 = vmatprep.subr.mxu0 %v94
    %1170 = vmatpush1.msra.mxu0 %v93
    %1171 = vmatprep.subr.mxu0 %v98
    %1172 = vmatpush1.msra.mxu0 %v97
    %1173 = vmatprep.subr.mxu0 %v102
    %1174 = vmatpush1.msra.mxu0 %v101
    %1175 = vmatprep.subr.mxu0 %v106
    %1176 = vmatpush1.msra.mxu0 %v105
    %1177 = vmatprep.subr.mxu0 %v110
    %1178 = vmatpush1.msra.mxu0 %v109
    %1179 = vmatprep.subr.mxu0 %v114
    %1180 = vmatpush1.msra.mxu0 %v113
    %1181 = vmatprep.subr.mxu0 %v118
    %1182 = vmatpush1.msra.mxu0 %v117
    %1183 = vmatprep.subr.mxu0 %v122
    %1184 = vmatpush1.msra.mxu0 %v121
    %1185 = vmatprep.subr.mxu0 %v126
    %1186 = vmatpush1.msra.mxu0 %v125
    %1187 = vmatprep.subr.mxu0 0.0
    %1188 = vmatpush1.msra.mxu0 0.0
    %1189 = vmatprep.subr.mxu0 0.0
    %1190 = vmatpush1.msra.mxu0 0.0
    %1191 = vmatprep.subr.mxu0 0.0
    %1192 = vmatpush1.msra.mxu0 0.0
    %1193 = vmatprep.subr.mxu0 0.0
    %1194 = vmatpush1.msra.mxu0 0.0
    %1195 = vmatprep.subr.mxu0 0.0
    %1196 = vmatpush1.msra.mxu0 0.0
    %1197 = vmatprep.subr.mxu0 0.0
    %1198 = vmatpush1.msra.mxu0 0.0
    %1199 = vmatprep.subr.mxu0 0.0
    %1200 = vmatpush1.msra.mxu0 0.0
    %1201 = vmatprep.subr.mxu0 0.0
    %1202 = vmatpush1.msra.mxu0 0.0
    %1203 = vmatprep.subr.mxu0 0.0
    %1204 = vmatpush1.msra.mxu0 0.0
    %1205 = vmatprep.subr.mxu0 0.0
    %1206 = vmatpush1.msra.mxu0 0.0
    %1207 = vmatprep.subr.mxu0 0.0
    %1208 = vmatpush1.msra.mxu0 0.0
    %1209 = vmatprep.subr.mxu0 0.0
    %1210 = vmatpush1.msra.mxu0 0.0
    %1211 = vmatprep.subr.mxu0 0.0
    %1212 = vmatpush1.msra.mxu0 0.0
    %1213 = vmatprep.subr.mxu0 0.0
    %1214 = vmatpush1.msra.mxu0 0.0
    %1215 = vmatprep.subr.mxu0 0.0
    %1216 = vmatpush1.msra.mxu0 0.0
    %1217 = vmatprep.subr.mxu0 0.0
    %1218 = vmatpush1.msra.mxu0 0.0
    %1219 = vmatprep.mubr.f32.mxu0 0.0
    %1220 = vmatmul.mubr.f32.gmra.mrb[0].mxu0 %v1072
    %v1221 = vpop.f32.mrb[0].mxu0
    %v1222 = vadd.f32 0.0, %v1221
    %v1223 = vpop.f32.mrb[0].mxu0
    %v1224 = vadd.f32 0.0, %v1223
    %1225 = vdwg.mxu0
    %v1226 = vadd.f32 %v1080, %v1151
    %v1227 = vadd.f32 %v1081, %v1153
    %v1228 = vadd.f32 %v1082, %v1222
    %v1229 = vadd.f32 %v1083, %v1224
    %v1230 = vxor.u32 %v1226, 2147483648
    %v1231 = vmul.f32 %v1230, 1.442695
    %v1232 = vpow.pop %v1231
    %v1233 = vadd.f32 %v1232, 1.0
    %v1234 = vrcp.pop %v1233
    %v1235 = vmul.f32 1.0, %v1234
    %v1236 = vxor.u32 %v1227, 2147483648
    %v1237 = vmul.f32 %v1236, 1.442695
    %v1238 = vpow.pop %v1237
    %v1239 = vadd.f32 %v1238, 1.0
    %v1240 = vrcp.pop %v1239
    %v1241 = vmul.f32 1.0, %v1240
    %v1242 = vtanh.pop %v1228
    %v1243 = vxor.u32 %v1229, 2147483648
    %v1244 = vmul.f32 %v1243, 1.442695
    %v1245 = vpow.pop %v1244
    %v1246 = vadd.f32 %v1245, 1.0
    %v1247 = vrcp.pop %v1246
    %v1248 = vmul.f32 1.0, %v1247
    %v1249 = vmul.f32 %v1241, %v1075
    %v1250 = vmul.f32 %v1235, %v1242
    %v1251 = vadd.f32 %v1249, %v1250
    %v1252 = vtanh.pop %v1251
    %v1253 = vmul.f32 %v1248, %v1252
    %s1254 = scalar_lea.vmem %s1, 40
    %v1255 = vld [vmem:[%s1254] sm:$0xff]
    %v1256 = vsub.f32 %v1253, %v1072
    %1258 = vset.pattern.permute.xlu0 0
    %1259 = vperm.xlu0 %1258, %v1255
    %v1260 = vpop.permute.xlu0 %1259
    %v1262 = vmul.f32 %v1260, %v1256
    %v1263 = vadd.f32 %v1072, %v1262
    %v1264 = vsub.f32 %v1251, %v1075
    %v1265 = vmul.f32 %v1260, %v1264
    %v1266 = vadd.f32 %v1075, %v1265
    %v1267 = vmul.f32 %v1260, %v1253
    %s1268 = scalar_lea.vmem [#allocation7], 40
    %1269 = vst [vmem:[%s1268] sm:$0xff] %v1267
    %s1270 = scalar_lea.vmem [#allocation2], 192
    %v1271 = vld [vmem:[%s1270] sm:$0xff]
    %v1272 = vld [vmem:[%s1270 + $0x8] sm:$0xff]
    %v1273 = vld [vmem:[%s1270 + $0x10] sm:$0xff]
    %v1274 = vld [vmem:[%s1270 + $0x18] sm:$0xff]
    %1275 = vmatprep.subr.mxu0 %v64
    %1276 = vmatpush1.msra.mxu0 %v63
    %1277 = vmatprep.subr.mxu0 %v68
    %1278 = vmatpush1.msra.mxu0 %v67
    %1279 = vmatprep.subr.mxu0 %v72
    %1280 = vmatpush1.msra.mxu0 %v71
    %1281 = vmatprep.subr.mxu0 %v76
    %1282 = vmatpush1.msra.mxu0 %v75
    %1283 = vmatprep.subr.mxu0 %v80
    %1284 = vmatpush1.msra.mxu0 %v79
    %1285 = vmatprep.subr.mxu0 %v84
    %1286 = vmatpush1.msra.mxu0 %v83
    %1287 = vmatprep.subr.mxu0 %v88
    %1288 = vmatpush1.msra.mxu0 %v87
    %1289 = vmatprep.subr.mxu0 %v92
    %1290 = vmatpush1.msra.mxu0 %v91
    %1291 = vmatprep.subr.mxu0 %v96
    %1292 = vmatpush1.msra.mxu0 %v95
    %1293 = vmatprep.subr.mxu0 %v100
    %1294 = vmatpush1.msra.mxu0 %v99
    %1295 = vmatprep.subr.mxu0 %v104
    %1296 = vmatpush1.msra.mxu0 %v103
    %1297 = vmatprep.subr.mxu0 %v108
    %1298 = vmatpush1.msra.mxu0 %v107
    %1299 = vmatprep.subr.mxu0 %v112
    %1300 = vmatpush1.msra.mxu0 %v111
    %1301 = vmatprep.subr.mxu0 %v116
    %1302 = vmatpush1.msra.mxu0 %v115
    %1303 = vmatprep.subr.mxu0 %v120
    %1304 = vmatpush1.msra.mxu0 %v119
    %1305 = vmatprep.subr.mxu0 %v124
    %1306 = vmatpush1.msra.mxu0 %v123
    %1307 = vmatprep.subr.mxu0 0.0
    %1308 = vmatpush1.msra.mxu0 0.0
    %1309 = vmatprep.subr.mxu0 0.0
    %1310 = vmatpush1.msra.mxu0 0.0
    %1311 = vmatprep.subr.mxu0 0.0
    %1312 = vmatpush1.msra.mxu0 0.0
    %1313 = vmatprep.subr.mxu0 0.0
    %1314 = vmatpush1.msra.mxu0 0.0
    %1315 = vmatprep.subr.mxu0 0.0
    %1316 = vmatpush1.msra.mxu0 0.0
    %1317 = vmatprep.subr.mxu0 0.0
    %1318 = vmatpush1.msra.mxu0 0.0
    %1319 = vmatprep.subr.mxu0 0.0
    %1320 = vmatpush1.msra.mxu0 0.0
    %1321 = vmatprep.subr.mxu0 0.0
    %1322 = vmatpush1.msra.mxu0 0.0
    %1323 = vmatprep.subr.mxu0 0.0
    %1324 = vmatpush1.msra.mxu0 0.0
    %1325 = vmatprep.subr.mxu0 0.0
    %1326 = vmatpush1.msra.mxu0 0.0
    %1327 = vmatprep.subr.mxu0 0.0
    %1328 = vmatpush1.msra.mxu0 0.0
    %1329 = vmatprep.subr.mxu0 0.0
    %1330 = vmatpush1.msra.mxu0 0.0
    %1331 = vmatprep.subr.mxu0 0.0
    %1332 = vmatpush1.msra.mxu0 0.0
    %1333 = vmatprep.subr.mxu0 0.0
    %1334 = vmatpush1.msra.mxu0 0.0
    %1335 = vmatprep.subr.mxu0 0.0
    %1336 = vmatpush1.msra.mxu0 0.0
    %1337 = vmatprep.subr.mxu0 0.0
    %1338 = vmatpush1.msra.mxu0 0.0
    %1339 = vmatprep.mubr.f32.mxu0 0.0
    %1340 = vmatmul.mubr.f32.gmra.mrb[0].mxu0 %v1263
    %v1341 = vpop.f32.mrb[0].mxu0
    %v1342 = vadd.f32 0.0, %v1341
    %v1343 = vpop.f32.mrb[0].mxu0
    %v1344 = vadd.f32 0.0, %v1343
    %1345 = vdwg.mxu0
    %1346 = vmatprep.subr.mxu0 %v66
    %1347 = vmatpush1.msra.mxu0 %v65
    %1348 = vmatprep.subr.mxu0 %v70
    %1349 = vmatpush1.msra.mxu0 %v69
    %1350 = vmatprep.subr.mxu0 %v74
    %1351 = vmatpush1.msra.mxu0 %v73
    %1352 = vmatprep.subr.mxu0 %v78
    %1353 = vmatpush1.msra.mxu0 %v77
    %1354 = vmatprep.subr.mxu0 %v82
    %1355 = vmatpush1.msra.mxu0 %v81
    %1356 = vmatprep.subr.mxu0 %v86
    %1357 = vmatpush1.msra.mxu0 %v85
    %1358 = vmatprep.subr.mxu0 %v90
    %1359 = vmatpush1.msra.mxu0 %v89
    %1360 = vmatprep.subr.mxu0 %v94
    %1361 = vmatpush1.msra.mxu0 %v93
    %1362 = vmatprep.subr.mxu0 %v98
    %1363 = vmatpush1.msra.mxu0 %v97
    %1364 = vmatprep.subr.mxu0 %v102
    %1365 = vmatpush1.msra.mxu0 %v101
    %1366 = vmatprep.subr.mxu0 %v106
    %1367 = vmatpush1.msra.mxu0 %v105
    %1368 = vmatprep.subr.mxu0 %v110
    %1369 = vmatpush1.msra.mxu0 %v109
    %1370 = vmatprep.subr.mxu0 %v114
    %1371 = vmatpush1.msra.mxu0 %v113
    %1372 = vmatprep.subr.mxu0 %v118
    %1373 = vmatpush1.msra.mxu0 %v117
    %1374 = vmatprep.subr.mxu0 %v122
    %1375 = vmatpush1.msra.mxu0 %v121
    %1376 = vmatprep.subr.mxu0 %v126
    %1377 = vmatpush1.msra.mxu0 %v125
    %1378 = vmatprep.subr.mxu0 0.0
    %1379 = vmatpush1.msra.mxu0 0.0
    %1380 = vmatprep.subr.mxu0 0.0
    %1381 = vmatpush1.msra.mxu0 0.0
    %1382 = vmatprep.subr.mxu0 0.0
    %1383 = vmatpush1.msra.mxu0 0.0
    %1384 = vmatprep.subr.mxu0 0.0
    %1385 = vmatpush1.msra.mxu0 0.0
    %1386 = vmatprep.subr.mxu0 0.0
    %1387 = vmatpush1.msra.mxu0 0.0
    %1388 = vmatprep.subr.mxu0 0.0
    %1389 = vmatpush1.msra.mxu0 0.0
    %1390 = vmatprep.subr.mxu0 0.0
    %1391 = vmatpush1.msra.mxu0 0.0
    %1392 = vmatprep.subr.mxu0 0.0
    %1393 = vmatpush1.msra.mxu0 0.0
    %1394 = vmatprep.subr.mxu0 0.0
    %1395 = vmatpush1.msra.mxu0 0.0
    %1396 = vmatprep.subr.mxu0 0.0
    %1397 = vmatpush1.msra.mxu0 0.0
    %1398 = vmatprep.subr.mxu0 0.0
    %1399 = vmatpush1.msra.mxu0 0.0
    %1400 = vmatprep.subr.mxu0 0.0
    %1401 = vmatpush1.msra.mxu0 0.0
    %1402 = vmatprep.subr.mxu0 0.0
    %1403 = vmatpush1.msra.mxu0 0.0
    %1404 = vmatprep.subr.mxu0 0.0
    %1405 = vmatpush1.msra.mxu0 0.0
    %1406 = vmatprep.subr.mxu0 0.0
    %1407 = vmatpush1.msra.mxu0 0.0
    %1408 = vmatprep.subr.mxu0 0.0
    %1409 = vmatpush1.msra.mxu0 0.0
    %1410 = vmatprep.mubr.f32.mxu0 0.0
    %1411 = vmatmul.mubr.f32.gmra.mrb[0].mxu0 %v1263
    %v1412 = vpop.f32.mrb[0].mxu0
    %v1413 = vadd.f32 0.0, %v1412
    %v1414 = vpop.f32.mrb[0].mxu0
    %v1415 = vadd.f32 0.0, %v1414
    %1416 = vdwg.mxu0
    %v1417 = vadd.f32 %v1271, %v1342
    %v1418 = vadd.f32 %v1272, %v1344
    %v1419 = vadd.f32 %v1273, %v1413
    %v1420 = vadd.f32 %v1274, %v1415
    %v1421 = vxor.u32 %v1417, 2147483648
    %v1422 = vmul.f32 %v1421, 1.442695
    %v1423 = vpow.pop %v1422
    %v1424 = vadd.f32 %v1423, 1.0
    %v1425 = vrcp.pop %v1424
    %v1426 = vmul.f32 1.0, %v1425
    %v1427 = vxor.u32 %v1418, 2147483648
    %v1428 = vmul.f32 %v1427, 1.442695
    %v1429 = vpow.pop %v1428
    %v1430 = vadd.f32 %v1429, 1.0
    %v1431 = vrcp.pop %v1430
    %v1432 = vmul.f32 1.0, %v1431
    %v1433 = vtanh.pop %v1419
    %v1434 = vxor.u32 %v1420, 2147483648
    %v1435 = vmul.f32 %v1434, 1.442695
    %v1436 = vpow.pop %v1435
    %v1437 = vadd.f32 %v1436, 1.0
    %v1438 = vrcp.pop %v1437
    %v1439 = vmul.f32 1.0, %v1438
    %v1440 = vmul.f32 %v1432, %v1266
    %v1441 = vmul.f32 %v1426, %v1433
    %v1442 = vadd.f32 %v1440, %v1441
    %v1443 = vtanh.pop %v1442
    %v1444 = vmul.f32 %v1439, %v1443
    %s1445 = scalar_lea.vmem %s1, 48
    %v1446 = vld [vmem:[%s1445] sm:$0xff]
    %v1447 = vsub.f32 %v1444, %v1263
    %1449 = vset.pattern.permute.xlu0 0
    %1450 = vperm.xlu0 %1449, %v1446
    %v1451 = vpop.permute.xlu0 %1450
    %v1453 = vmul.f32 %v1451, %v1447
    %v1454 = vadd.f32 %v1263, %v1453
    %v1455 = vsub.f32 %v1442, %v1266
    %v1456 = vmul.f32 %v1451, %v1455
    %v1457 = vadd.f32 %v1266, %v1456
    %v1458 = vmul.f32 %v1451, %v1444
    %s1459 = scalar_lea.vmem [#allocation7], 48
    %1460 = vst [vmem:[%s1459] sm:$0xff] %v1458
    %s1461 = scalar_lea.vmem [#allocation2], 224
    %v1462 = vld [vmem:[%s1461] sm:$0xff]
    %v1463 = vld [vmem:[%s1461 + $0x8] sm:$0xff]
    %v1464 = vld [vmem:[%s1461 + $0x10] sm:$0xff]
    %v1465 = vld [vmem:[%s1461 + $0x18] sm:$0xff]
    %1466 = vmatprep.subr.mxu0 %v64
    %1467 = vmatpush1.msra.mxu0 %v63
    %1468 = vmatprep.subr.mxu0 %v68
    %1469 = vmatpush1.msra.mxu0 %v67
    %1470 = vmatprep.subr.mxu0 %v72
    %1471 = vmatpush1.msra.mxu0 %v71
    %1472 = vmatprep.subr.mxu0 %v76
    %1473 = vmatpush1.msra.mxu0 %v75
    %1474 = vmatprep.subr.mxu0 %v80
    %1475 = vmatpush1.msra.mxu0 %v79
    %1476 = vmatprep.subr.mxu0 %v84
    %1477 = vmatpush1.msra.mxu0 %v83
    %1478 = vmatprep.subr.mxu0 %v88
    %1479 = vmatpush1.msra.mxu0 %v87
    %1480 = vmatprep.subr.mxu0 %v92
    %1481 = vmatpush1.msra.mxu0 %v91
    %1482 = vmatprep.subr.mxu0 %v96
    %1483 = vmatpush1.msra.mxu0 %v95
    %1484 = vmatprep.subr.mxu0 %v100
    %1485 = vmatpush1.msra.mxu0 %v99
    %1486 = vmatprep.subr.mxu0 %v104
    %1487 = vmatpush1.msra.mxu0 %v103
    %1488 = vmatprep.subr.mxu0 %v108
    %1489 = vmatpush1.msra.mxu0 %v107
    %1490 = vmatprep.subr.mxu0 %v112
    %1491 = vmatpush1.msra.mxu0 %v111
    %1492 = vmatprep.subr.mxu0 %v116
    %1493 = vmatpush1.msra.mxu0 %v115
    %1494 = vmatprep.subr.mxu0 %v120
    %1495 = vmatpush1.msra.mxu0 %v119
    %1496 = vmatprep.subr.mxu0 %v124
    %1497 = vmatpush1.msra.mxu0 %v123
    %1498 = vmatprep.subr.mxu0 0.0
    %1499 = vmatpush1.msra.mxu0 0.0
    %1500 = vmatprep.subr.mxu0 0.0
    %1501 = vmatpush1.msra.mxu0 0.0
    %1502 = vmatprep.subr.mxu0 0.0
    %1503 = vmatpush1.msra.mxu0 0.0
    %1504 = vmatprep.subr.mxu0 0.0
    %1505 = vmatpush1.msra.mxu0 0.0
    %1506 = vmatprep.subr.mxu0 0.0
    %1507 = vmatpush1.msra.mxu0 0.0
    %1508 = vmatprep.subr.mxu0 0.0
    %1509 = vmatpush1.msra.mxu0 0.0
    %1510 = vmatprep.subr.mxu0 0.0
    %1511 = vmatpush1.msra.mxu0 0.0
    %1512 = vmatprep.subr.mxu0 0.0
    %1513 = vmatpush1.msra.mxu0 0.0
    %1514 = vmatprep.subr.mxu0 0.0
    %1515 = vmatpush1.msra.mxu0 0.0
    %1516 = vmatprep.subr.mxu0 0.0
    %1517 = vmatpush1.msra.mxu0 0.0
    %1518 = vmatprep.subr.mxu0 0.0
    %1519 = vmatpush1.msra.mxu0 0.0
    %1520 = vmatprep.subr.mxu0 0.0
    %1521 = vmatpush1.msra.mxu0 0.0
    %1522 = vmatprep.subr.mxu0 0.0
    %1523 = vmatpush1.msra.mxu0 0.0
    %1524 = vmatprep.subr.mxu0 0.0
    %1525 = vmatpush1.msra.mxu0 0.0
    %1526 = vmatprep.subr.mxu0 0.0
    %1527 = vmatpush1.msra.mxu0 0.0
    %1528 = vmatprep.subr.mxu0 0.0
    %1529 = vmatpush1.msra.mxu0 0.0
    %1530 = vmatprep.mubr.f32.mxu0 0.0
    %1531 = vmatmul.mubr.f32.gmra.mrb[0].mxu0 %v1454
    %v1532 = vpop.f32.mrb[0].mxu0
    %v1533 = vadd.f32 0.0, %v1532
    %v1534 = vpop.f32.mrb[0].mxu0
    %v1535 = vadd.f32 0.0, %v1534
    %1536 = vdwg.mxu0
    %1537 = vmatprep.subr.mxu0 %v66
    %1538 = vmatpush1.msra.mxu0 %v65
    %1539 = vmatprep.subr.mxu0 %v70
    %1540 = vmatpush1.msra.mxu0 %v69
    %1541 = vmatprep.subr.mxu0 %v74
    %1542 = vmatpush1.msra.mxu0 %v73
    %1543 = vmatprep.subr.mxu0 %v78
    %1544 = vmatpush1.msra.mxu0 %v77
    %1545 = vmatprep.subr.mxu0 %v82
    %1546 = vmatpush1.msra.mxu0 %v81
    %1547 = vmatprep.subr.mxu0 %v86
    %1548 = vmatpush1.msra.mxu0 %v85
    %1549 = vmatprep.subr.mxu0 %v90
    %1550 = vmatpush1.msra.mxu0 %v89
    %1551 = vmatprep.subr.mxu0 %v94
    %1552 = vmatpush1.msra.mxu0 %v93
    %1553 = vmatprep.subr.mxu0 %v98
    %1554 = vmatpush1.msra.mxu0 %v97
    %1555 = vmatprep.subr.mxu0 %v102
    %1556 = vmatpush1.msra.mxu0 %v101
    %1557 = vmatprep.subr.mxu0 %v106
    %1558 = vmatpush1.msra.mxu0 %v105
    %1559 = vmatprep.subr.mxu0 %v110
    %1560 = vmatpush1.msra.mxu0 %v109
    %1561 = vmatprep.subr.mxu0 %v114
    %1562 = vmatpush1.msra.mxu0 %v113
    %1563 = vmatprep.subr.mxu0 %v118
    %1564 = vmatpush1.msra.mxu0 %v117
    %1565 = vmatprep.subr.mxu0 %v122
    %1566 = vmatpush1.msra.mxu0 %v121
    %1567 = vmatprep.subr.mxu0 %v126
    %1568 = vmatpush1.msra.mxu0 %v125
    %1569 = vmatprep.subr.mxu0 0.0
    %1570 = vmatpush1.msra.mxu0 0.0
    %1571 = vmatprep.subr.mxu0 0.0
    %1572 = vmatpush1.msra.mxu0 0.0
    %1573 = vmatprep.subr.mxu0 0.0
    %1574 = vmatpush1.msra.mxu0 0.0
    %1575 = vmatprep.subr.mxu0 0.0
    %1576 = vmatpush1.msra.mxu0 0.0
    %1577 = vmatprep.subr.mxu0 0.0
    %1578 = vmatpush1.msra.mxu0 0.0
    %1579 = vmatprep.subr.mxu0 0.0
    %1580 = vmatpush1.msra.mxu0 0.0
    %1581 = vmatprep.subr.mxu0 0.0
    %1582 = vmatpush1.msra.mxu0 0.0
    %1583 = vmatprep.subr.mxu0 0.0
    %1584 = vmatpush1.msra.mxu0 0.0
    %1585 = vmatprep.subr.mxu0 0.0
    %1586 = vmatpush1.msra.mxu0 0.0
    %1587 = vmatprep.subr.mxu0 0.0
    %1588 = vmatpush1.msra.mxu0 0.0
    %1589 = vmatprep.subr.mxu0 0.0
    %1590 = vmatpush1.msra.mxu0 0.0
    %1591 = vmatprep.subr.mxu0 0.0
    %1592 = vmatpush1.msra.mxu0 0.0
    %1593 = vmatprep.subr.mxu0 0.0
    %1594 = vmatpush1.msra.mxu0 0.0
    %1595 = vmatprep.subr.mxu0 0.0
    %1596 = vmatpush1.msra.mxu0 0.0
    %1597 = vmatprep.subr.mxu0 0.0
    %1598 = vmatpush1.msra.mxu0 0.0
    %1599 = vmatprep.subr.mxu0 0.0
    %1600 = vmatpush1.msra.mxu0 0.0
    %1601 = vmatprep.mubr.f32.mxu0 0.0
    %1602 = vmatmul.mubr.f32.gmra.mrb[0].mxu0 %v1454
    %v1603 = vpop.f32.mrb[0].mxu0
    %v1604 = vadd.f32 0.0, %v1603
    %v1605 = vpop.f32.mrb[0].mxu0
    %v1606 = vadd.f32 0.0, %v1605
    %1607 = vdwg.mxu0
    %v1608 = vadd.f32 %v1462, %v1533
    %v1609 = vadd.f32 %v1463, %v1535
    %v1610 = vadd.f32 %v1464, %v1604
    %v1611 = vadd.f32 %v1465, %v1606
    %v1612 = vxor.u32 %v1608, 2147483648
    %v1613 = vmul.f32 %v1612, 1.442695
    %v1614 = vpow.pop %v1613
    %v1615 = vadd.f32 %v1614, 1.0
    %v1616 = vrcp.pop %v1615
    %v1617 = vmul.f32 1.0, %v1616
    %v1618 = vxor.u32 %v1609, 2147483648
    %v1619 = vmul.f32 %v1618, 1.442695
    %v1620 = vpow.pop %v1619
    %v1621 = vadd.f32 %v1620, 1.0
    %v1622 = vrcp.pop %v1621
    %v1623 = vmul.f32 1.0, %v1622
    %v1624 = vtanh.pop %v1610
    %v1625 = vxor.u32 %v1611, 2147483648
    %v1626 = vmul.f32 %v1625, 1.442695
    %v1627 = vpow.pop %v1626
    %v1628 = vadd.f32 %v1627, 1.0
    %v1629 = vrcp.pop %v1628
    %v1630 = vmul.f32 1.0, %v1629
    %v1631 = vmul.f32 %v1623, %v1457
    %v1632 = vmul.f32 %v1617, %v1624
    %v1633 = vadd.f32 %v1631, %v1632
    %v1634 = vtanh.pop %v1633
    %v1635 = vmul.f32 %v1630, %v1634
    %s1636 = scalar_lea.vmem %s1, 56
    %v1637 = vld [vmem:[%s1636] sm:$0xff]
    %v1638 = vsub.f32 %v1635, %v1454
    %1640 = vset.pattern.permute.xlu0 0
    %1641 = vperm.xlu0 %1640, %v1637
    %v1642 = vpop.permute.xlu0 %1641
    %v1644 = vmul.f32 %v1642, %v1638
    %v1645 = vadd.f32 %v1454, %v1644
    %v1646 = vsub.f32 %v1633, %v1457
    %v1647 = vmul.f32 %v1642, %v1646
    %v1648 = vadd.f32 %v1457, %v1647
    %v1649 = vmul.f32 %v1642, %v1635
    %s1650 = scalar_lea.vmem [#allocation7], 56
    %1651 = vst [vmem:[%s1650] sm:$0xff] %v1649
    %1652 = vst [vmem:[#allocation8] sm:$0xff] %v1645
    %1653 = vst [vmem:[#allocation10] sm:$0xff] %v1648
    // Predicated region
    $region34: #{tpu_custom_call.1} parent=1 // pred_check
      _
    $region35: #{tpu_custom_call.1} parent=1 // pred_check_branch
      %1655 = sbr.rel (0) target = $region37
    $region36: #{tpu_custom_call.1} parent=1 // pred_region
      %s1657 = ssub.s32 1024, 1024
      %1658 = vsyncadd [#allocation4], %s1657
      %s1659 = sshll.u32 [#allocation7], 4
      %s1660 = int_to_ptr.vmem [resolvable:$true] %s1659
      %1665 = dma.vmem_to_hbm [thread:$0]  %s1660, 1024, %s5, [#allocation4], 128, 128, 8
    $region37: #{tpu_custom_call.1} parent=1 // pred_fallthru
      _
    // Predicated region
    $region38: #{tpu_custom_call.1} parent=1 // pred_check
      _
    $region39: #{tpu_custom_call.1} parent=1 // pred_check_branch
      %1667 = sbr.rel (0) target = $region41
    $region40: #{tpu_custom_call.1} parent=1 // pred_region
      %s1669 = ssub.s32 128, 128
      %1670 = vsyncadd [#allocation9], %s1669
      %s1672 = sshll.u32 [#allocation8], 4
      %s1673 = int_to_ptr.vmem [resolvable:$true] %s1672
      %1675 = dma.vmem_to_hbm [thread:$0]  %s1673, 128, %s6, [#allocation9]
    $region41: #{tpu_custom_call.1} parent=1 // pred_fallthru
      _
    // Predicated region
    $region42: #{tpu_custom_call.1} parent=1 // pred_check
      _
    $region43: #{tpu_custom_call.1} parent=1 // pred_check_branch
      %1677 = sbr.rel (0) target = $region45
    $region44: #{tpu_custom_call.1} parent=1 // pred_region
      %s1679 = ssub.s32 128, 128
      %1680 = vsyncadd [#allocation9], %s1679
      %s1682 = sshll.u32 [#allocation10], 4
      %s1683 = int_to_ptr.vmem [resolvable:$true] %s1682
      %1685 = dma.vmem_to_hbm [thread:$0]  %s1683, 128, %s7, [#allocation9]
    $region45: #{tpu_custom_call.1} parent=1 // pred_fallthru
      _
    // Predicated region
    $region46: #{tpu_custom_call.1} parent=1 // pred_check
      _
    $region47: #{tpu_custom_call.1} parent=1 // pred_check_branch
      %1687 = sbr.rel (0) target = $region49
    $region48: #{tpu_custom_call.1} parent=1 // pred_region
      %1688 = dma.done [#allocation4], 1024
    $region49: #{tpu_custom_call.1} parent=1 // pred_fallthru
      _
    // Predicated region
    $region50: #{tpu_custom_call.1} parent=1 // pred_check
      _
    $region51: #{tpu_custom_call.1} parent=1 // pred_check_branch
      %1690 = sbr.rel (0) target = $region53
    $region52: #{tpu_custom_call.1} parent=1 // pred_region
      %1691 = dma.done [#allocation9], 128
    $region53: #{tpu_custom_call.1} parent=1 // pred_fallthru
      _
    // Predicated region
    $region54: #{tpu_custom_call.1} parent=1 // pred_check
      _
    $region55: #{tpu_custom_call.1} parent=1 // pred_check_branch
      %1693 = sbr.rel (0) target = $region57
    $region56: #{tpu_custom_call.1} parent=1 // pred_region
      %1694 = dma.done [#allocation9], 128
    $region57: #{tpu_custom_call.1} parent=1 // pred_fallthru
      _
    %1695 = vsyncpa [#allocation3], 1
    %1696 = vsyncpa [#allocation6], 1
    %1697 = vsyncpa [#allocation4], 1
    %1698 = vsyncpa [#allocation9], 1

</llo_original>
